<compile_context>
chip_gen: v7x
topology: tpu7x:2x2x1
jax: 0.10.0
libtpu: 0.0.40
codegen_flags: <defaults>
</compile_context>

<pallas_src>
import math

import jax
import jax.numpy as jnp
from jax.experimental import pallas as pl
from jax.experimental.pallas import tpu as pltpu

BN_EPS = 1e-5
LOG_2 = math.log(2.0)
LANE = 128

VMEM_SPEC = pl.BlockSpec(memory_space=pltpu.MemorySpace.VMEM)
SMEM_SPEC = pl.BlockSpec(memory_space=pltpu.MemorySpace.SMEM)


def _round_up(x, m):
    return (x + m - 1) // m * m


def _pad_to(a, rows, cols):
    return jnp.pad(a, ((0, rows - a.shape[0]), (0, cols - a.shape[1])))


def _vmem_budget():
    """Per-generation scoped-VMEM budget (~3/4 of physical, capped at 100 MiB)."""
    try:
        info = pltpu.get_tpu_info()
        cap = int(getattr(info, "vmem_capacity_bytes", 64 * 1024 * 1024))
    except Exception:
        cap = 64 * 1024 * 1024          # conservative fallback (fits v7x too)
    return max(32 << 20, min(cap * 3 // 4, 100 << 20))


def _plan_encoder(n, hp, budget):
    """Pick (padded node count Np, adjacency column-block size tk)."""
    np0 = _round_up(max(n, 8), 8)
    resident0 = 6 * np0 * hp * 4 + (4 << 20)      # scratch + feat + out bufs + slack
    if 2 * np0 * np0 * 2 + resident0 <= budget:   # whole bf16 adjacency resident
        return np0, np0
    # Streamed path: tk columns of bf16 adjacency, double buffered.
    np1 = _round_up(n, LANE)
    avail = budget - (6 * np1 * hp * 4 + (4 << 20))
    tk = (max(avail, 4 * np1 * LANE) // (4 * np1)) // LANE * LANE
    tk = int(max(LANE, min(tk, np1)))
    np_ = _round_up(n, tk)
    return np_, tk


# ----------------------------------------------------------------------------
# Kernel 1: GIN encoder.  Grid = (layer, adjacency K-block); per layer:
#   agg = x + A @ x                     (GINConv 'sum', eps = 0)
#   h   = Linear2(ReLU(Linear1(agg)))   (apply_func)
#   h   = ReLU(h)                       (outer F.relu)
#   y   = BatchNorm1d(h)                (training-mode batch stats, real rows)
#   out[:, l*128:(l+1)*128] = y         (lane-dense; real cols 0..hid-1)
# ----------------------------------------------------------------------------
def _make_encoder_kernel(n_real, tk):
    def kernel(adj_ref, feat_ref, w1_ref, w2_ref, vec_ref, o_ref, x_scr, agg_scr):
        l = pl.program_id(0)
        k = pl.program_id(1)
        nk = pl.num_programs(1)

        @pl.when(jnp.logical_and(l == 0, k == 0))
        def _():
            x_scr[...] = feat_ref[...]

        @pl.when(k == 0)
        def _():
            agg_scr[...] = x_scr[...]          # the "+ x" term (eps = 0)

        start = pl.multiple_of(k * tk, 8)
        x_blk = x_scr[pl.ds(start, tk), :].astype(jnp.bfloat16)
        agg_scr[...] += jnp.dot(adj_ref[...], x_blk,
                                preferred_element_type=jnp.float32)

        @pl.when(k == nk - 1)
        def _():
            agg = agg_scr[...]
            b1 = vec_ref[0:1, :]
            b2 = vec_ref[1:2, :]
            gamma = vec_ref[2:3, :]
            beta = vec_ref[3:4, :]
            h = jnp.dot(agg.astype(jnp.bfloat16), w1_ref[...],
                        preferred_element_type=jnp.float32) + b1
            h = jnp.maximum(h, 0.0)
            h = jnp.dot(h.astype(jnp.bfloat16), w2_ref[...],
                        preferred_element_type=jnp.float32) + b2
            h = jnp.maximum(h, 0.0)

            rows = h.shape[0]
            inv_n = 1.0 / float(n_real)
            if rows == n_real:
                mean = jnp.sum(h, axis=0, keepdims=True) * inv_n
                var = jnp.maximum(
                    jnp.sum(h * h, axis=0, keepdims=True) * inv_n - mean * mean, 0.0)
                y = (h - mean) * jax.lax.rsqrt(var + BN_EPS)
                y = y * gamma + beta
            else:
                # Exclude zero-padded rows from the batch statistics.
                rmask = (jax.lax.broadcasted_iota(jnp.int32, (rows, 1), 0)
                         < n_real).astype(jnp.float32)
                hm = h * rmask
                mean = jnp.sum(hm, axis=0, keepdims=True) * inv_n
                var = jnp.maximum(
                    jnp.sum(hm * hm, axis=0, keepdims=True) * inv_n - mean * mean, 0.0)
                y = (h - mean) * jax.lax.rsqrt(var + BN_EPS)
                y = (y * gamma + beta) * rmask

            o_ref[...] = y          # lane-dense [Np, 128] slab for this layer
            x_scr[...] = y          # padded lanes / rows are exactly zero
    return kernel


def gin_encoder(adj, feat, gin_kp, *, n_layer, hp, tk, n_real, vmem_limit):
    np_ = adj.shape[0]
    nk = np_ // tk
    return pl.pallas_call(
        _make_encoder_kernel(n_real, tk),
        out_shape=jax.ShapeDtypeStruct((np_, n_layer * hp), jnp.float32),
        grid=(n_layer, nk),
        in_specs=[
            pl.BlockSpec((np_, tk), lambda l, k: (0, k)),          # bf16 adjacency
            pl.BlockSpec((np_, hp), lambda l, k: (0, 0)),          # padded features
            pl.BlockSpec((None, hp, hp), lambda l, k: (l, 0, 0)),  # W1 of layer l
            pl.BlockSpec((None, hp, hp), lambda l, k: (l, 0, 0)),  # W2 of layer l
            pl.BlockSpec((None, 4, hp), lambda l, k: (l, 0, 0)),   # b1,b2,gamma,beta
        ],
        out_specs=pl.BlockSpec((np_, hp), lambda l, k: (0, l)),
        scratch_shapes=[pltpu.VMEM((np_, hp), jnp.float32),        # current x
                        pltpu.VMEM((np_, hp), jnp.float32)],       # agg accumulator
        compiler_params=pltpu.CompilerParams(
            dimension_semantics=("arbitrary", "arbitrary"),
            vmem_limit_bytes=vmem_limit),
    )(adj, feat, gin_kp["w1"], gin_kp["w2"], gin_kp["vec"])


# ----------------------------------------------------------------------------
# Kernel 2: FeedforwardNetwork (global discriminator; tiny, gridless)
#   t = x @ [W1 | Wj] + [b1 | bj];  out = ReLU(L3(ReLU(L2(ReLU(t[:, :H]))))) + t[:, H:]
# ----------------------------------------------------------------------------
def _ffn_kernel(x_ref, wf_ref, bf_ref, w2_ref, b2_ref, w3_ref, b3_ref, o_ref):
    hd = w2_ref.shape[0]
    x = x_ref[...].astype(jnp.bfloat16)
    t = jnp.dot(x, wf_ref[...], preferred_element_type=jnp.float32) + bf_ref[...]
    h = jnp.maximum(t[:, :hd], 0.0)
    jump = t[:, hd:]
    h = jnp.maximum(
        jnp.dot(h.astype(jnp.bfloat16), w2_ref[...],
                preferred_element_type=jnp.float32) + b2_ref[...], 0.0)
    h = jnp.maximum(
        jnp.dot(h.astype(jnp.bfloat16), w3_ref[...],
                preferred_element_type=jnp.float32) + b3_ref[...], 0.0)
    o_ref[...] = h + jump


def ffn_forward(x, kp, *, vmem_limit):
    n = x.shape[0]
    hd = kp["w2"].shape[0]
    return pl.pallas_call(
        _ffn_kernel,
        out_shape=jax.ShapeDtypeStruct((n, hd), jnp.float32),
        in_specs=[VMEM_SPEC] * 7,
        out_specs=VMEM_SPEC,
        compiler_params=pltpu.CompilerParams(vmem_limit_bytes=vmem_limit),
    )(x, kp["wf"], kp["bf"], kp["w2"], kp["b2"], kp["w3"], kp["b3"])


# ----------------------------------------------------------------------------
# Kernel 3: fused local FFN + JSD loss, row-tiled over nodes.
#   local_h = FFN(local_emb_tile);  res = local_h @ global_h.T
#   E_pos = sum(pos * (log2 - softplus(-res))) / N
#   E_neg = sum(neg * (softplus(-res) + res - log2)) / (N * (G - 1))
#   loss  = E_neg - E_pos        (masked padded rows/cols contribute 0)
# ----------------------------------------------------------------------------
def _make_loss_kernel(n_real, g_real, hd):
    inv_pos = 1.0 / float(n_real)
    inv_neg = 1.0 / float(n_real * (g_real - 1))

    def kernel(x_ref, gid_ref, wf_ref, bf_ref, w2_ref, b2_ref, w3_ref, b3_ref,
               gt_ref, o_ref, acc_ref):
        i = pl.program_id(0)

        @pl.when(i == 0)
        def _():
            acc_ref[0] = 0.0

        x = x_ref[...].astype(jnp.bfloat16)
        t = jnp.dot(x, wf_ref[...], preferred_element_type=jnp.float32) + bf_ref[...]
        h = jnp.maximum(t[:, :hd], 0.0)
        jump = t[:, hd:]
        h = jnp.maximum(
            jnp.dot(h.astype(jnp.bfloat16), w2_ref[...],
                    preferred_element_type=jnp.float32) + b2_ref[...], 0.0)
        h = jnp.maximum(
            jnp.dot(h.astype(jnp.bfloat16), w3_ref[...],
                    preferred_element_type=jnp.float32) + b3_ref[...], 0.0)
        local_h = h + jump                                        # [tm, hd]

        res = jnp.dot(local_h.astype(jnp.bfloat16), gt_ref[...],
                      preferred_element_type=jnp.float32)         # [tm, Gp]
        tm, gp = res.shape
        ids = gid_ref[...]                                        # [tm, 1] int32
        cols = jax.lax.broadcasted_iota(jnp.int32, (tm, gp), 1)
        valid = ids >= 0
        pos = jnp.logical_and(cols == ids, valid)
        neg = jnp.logical_and(jnp.logical_and(cols != ids, valid), cols < g_real)
        # softplus(-res), numerically stable.
        sp = jnp.maximum(-res, 0.0) + jnp.log(1.0 + jnp.exp(-jnp.abs(res)))
        e_pos = jnp.sum(jnp.where(pos, LOG_2 - sp, 0.0)) * inv_pos
        e_neg = jnp.sum(jnp.where(neg, sp + res - LOG_2, 0.0)) * inv_neg
        acc_ref[0] += e_neg - e_pos

        @pl.when(i == pl.num_programs(0) - 1)
        def _():
            o_ref[0] = acc_ref[0]
    return kernel


def fused_local_jsd_loss(local_slab, gid, kp, gt, *, n_real, g_real,
                         row_tile=512, vmem_limit):
    np_, kd = local_slab.shape
    hd = kp["w2"].shape[0]
    gp = gt.shape[1]
    tm = np_ if np_ <= row_tile else row_tile
    np_pad = _round_up(np_, tm)
    if np_pad != np_:
        local_slab = jnp.pad(local_slab, ((0, np_pad - np_), (0, 0)))
        gid = jnp.pad(gid, ((0, np_pad - np_), (0, 0)), constant_values=-1)
    out = pl.pallas_call(
        _make_loss_kernel(n_real, g_real, hd),
        out_shape=jax.ShapeDtypeStruct((1,), jnp.float32),
        grid=(np_pad // tm,),
        in_specs=[
            pl.BlockSpec((tm, kd), lambda i: (i, 0)),
            pl.BlockSpec((tm, 1), lambda i: (i, 0)),
            pl.BlockSpec((kd, 2 * hd), lambda i: (0, 0)),
            pl.BlockSpec((1, 2 * hd), lambda i: (0, 0)),
            pl.BlockSpec((hd, hd), lambda i: (0, 0)),
            pl.BlockSpec((1, hd), lambda i: (0, 0)),
            pl.BlockSpec((hd, hd), lambda i: (0, 0)),
            pl.BlockSpec((1, hd), lambda i: (0, 0)),
            pl.BlockSpec((hd, gp), lambda i: (0, 0)),
        ],
        out_specs=SMEM_SPEC,
        scratch_shapes=[pltpu.SMEM((1,), jnp.float32)],
        compiler_params=pltpu.CompilerParams(
            dimension_semantics=("arbitrary",),
            vmem_limit_bytes=vmem_limit),
    )(local_slab, gid, kp["wf"], kp["bf"], kp["w2"], kp["b2"],
      kp["w3"], kp["b3"], gt)
    return out[0]


# ----------------------------------------------------------------------------
# Parameter construction (PyTorch-shaped, stored [in, out]) and device prep.
# ----------------------------------------------------------------------------
def init_linear(key, in_dim, out_dim):
    k_w, k_b = jax.random.split(key)
    w = jax.random.normal(k_w, (in_dim, out_dim), jnp.float32) * 0.1
    b = jax.random.normal(k_b, (1, out_dim), jnp.float32) * 0.1
    return w, b


def init_ffn(key, in_dim, hid_dim):
    k1, k2, k3, kj = jax.random.split(key, 4)
    return {"w1b1": init_linear(k1, in_dim, hid_dim),
            "w2b2": init_linear(k2, hid_dim, hid_dim),
            "w3b3": init_linear(k3, hid_dim, hid_dim),
            "wjbj": init_linear(kj, in_dim, hid_dim)}


def init_infograph(key, in_dim, hid_dim, n_layer):
    keys = jax.random.split(key, n_layer + 2)
    gin_layers = []
    for i in range(n_layer):
        n_in = in_dim if i == 0 else hid_dim
        k1, k2 = jax.random.split(keys[i])
        w1, b1 = init_linear(k1, n_in, hid_dim)
        w2, b2 = init_linear(k2, hid_dim, hid_dim)
        gamma = jnp.ones((1, hid_dim), jnp.float32)   # BatchNorm1d weight init
        beta = jnp.zeros((1, hid_dim), jnp.float32)   # BatchNorm1d bias init
        gin_layers.append((w1, b1, w2, b2, gamma, beta))
    emb_dim = hid_dim * n_layer
    return {"gin": gin_layers,
            "local_d": init_ffn(keys[n_layer], emb_dim, emb_dim),
            "global_d": init_ffn(keys[n_layer + 1], emb_dim, emb_dim)}


def prepare_params(params, in_dim, hid_dim, n_layer):
    """Pad to 128-lane layouts, pack per-layer tensors, cast matmul weights to bf16.

    Zero-padded rows/columns stay exactly zero through every layer (ReLU /
    BN(gamma=0, beta=0) / zero bias), so the math is unchanged."""
    hp = _round_up(hid_dim, LANE)          # padded GIN layer width
    emb = hid_dim * n_layer
    hd = _round_up(emb, LANE)              # padded FFN hidden/out width
    assert in_dim <= hp

    w1s, w2s, vecs = [], [], []
    for (w1, b1, w2, b2, gamma, beta) in params["gin"]:
        w1s.append(_pad_to(w1, hp, hp))
        w2s.append(_pad_to(w2, hp, hp))
        vecs.append(jnp.concatenate(
            [_pad_to(b1, 1, hp), _pad_to(b2, 1, hp),
             _pad_to(gamma, 1, hp), _pad_to(beta, 1, hp)], axis=0))
    gin = {"w1": jnp.stack(w1s).astype(jnp.bfloat16),
           "w2": jnp.stack(w2s).astype(jnp.bfloat16),
           "vec": jnp.stack(vecs)}

    def scatter_rows(w):
        # [emb, C] -> [n_layer*hp, C]; row l*hid+r -> l*hp+r (padded-slab layout)
        parts = []
        for l in range(n_layer):
            parts.append(jnp.pad(w[l * hid_dim:(l + 1) * hid_dim],
                                 ((0, hp - hid_dim), (0, 0))))
        return jnp.concatenate(parts, axis=0)

    def prep_ffn(fp, scatter):
        w1, b1 = fp["w1b1"]; w2, b2 = fp["w2b2"]
        w3, b3 = fp["w3b3"]; wj, bj = fp["wjbj"]
        w1p = _pad_to(w1, emb, hd)
        wjp = _pad_to(wj, emb, hd)
        if scatter:                           # local: consumes padded encoder slab
            w1p = scatter_rows(w1p)
            wjp = scatter_rows(wjp)
        else:                                 # global: input cols padded emb -> hd
            w1p = _pad_to(w1p, hd, hd)
            wjp = _pad_to(wjp, hd, hd)
        wf = jnp.concatenate([w1p, wjp], axis=1)
        bf = jnp.concatenate([_pad_to(b1, 1, hd), _pad_to(bj, 1, hd)], axis=1)
        return {"wf": wf.astype(jnp.bfloat16), "bf": bf,
                "w2": _pad_to(w2, hd, hd).astype(jnp.bfloat16),
                "b2": _pad_to(b2, 1, hd),
                "w3": _pad_to(w3, hd, hd).astype(jnp.bfloat16),
                "b3": _pad_to(b3, 1, hd)}

    return {"gin": gin,
            "local_d": prep_ffn(params["local_d"], scatter=True),
            "global_d": prep_ffn(params["global_d"], scatter=False)}


# ----------------------------------------------------------------------------
# Full InfoGraph forward
# ----------------------------------------------------------------------------
def make_infograph_forward(in_dim, hid_dim, n_layer, num_graphs, *, loss_row_tile=512):
    assert num_graphs > 1, "JSD loss divides by num_graphs - 1; need >= 2 graphs"
    hp = _round_up(hid_dim, LANE)
    emb = hid_dim * n_layer
    hd = _round_up(emb, LANE)
    gp = _round_up(num_graphs, LANE)
    budget = _vmem_budget()

    @jax.jit
    def forward(adj, feat, graph_id, kparams):
        n = adj.shape[0]
        np_, tk = _plan_encoder(n, hp, budget)

        # bf16 adjacency + zero padding to the streaming block size (host-side
        # of the kernel: the kernel DMA sees bf16, half the bytes).
        adj_p = jnp.pad(adj, ((0, np_ - n), (0, np_ - n))).astype(jnp.bfloat16)
        feat_p = jnp.pad(feat, ((0, np_ - n), (0, hp - feat.shape[1])))

        # GINEncoder: lane-dense [Np, n_layer*128] slab (real cols 0..hid-1 per layer)
        slab = gin_encoder(adj_p, feat_p, kparams["gin"],
                           n_layer=n_layer, hp=hp, tk=tk,
                           n_real=n, vmem_limit=budget)

        # SortPooling(k=1) on the real rows / real columns only.
        # TODO(synk): per-node sort + per-graph top-1 select has no clean Pallas
        # TPU equivalent; kept as plain-JAX glue around the kernels.
        local_real = jnp.concatenate(
            [slab[:n, l * hp:l * hp + hid_dim] for l in range(n_layer)], axis=1)
        feat_sorted = jnp.sort(local_real, axis=-1)
        last = feat_sorted[:, -1]
        scores = jnp.where(graph_id[:, None] == jnp.arange(num_graphs)[None, :],
                           last[:, None], -jnp.inf)
        top_idx = jnp.argmax(scores, axis=0)          # [G]
        global_emb = feat_sorted[top_idx]             # [G, emb]

        # Global discriminator (tiny), then pre-transpose + lane-pad for the loss.
        g_rows = _round_up(num_graphs, 8)
        ge_p = jnp.pad(global_emb, ((0, g_rows - num_graphs), (0, hd - emb)))
        global_h = ffn_forward(ge_p, kparams["global_d"],
                               vmem_limit=budget)[:num_graphs]    # [G, hd]
        gt = jnp.pad(global_h.T, ((0, 0), (0, gp - num_graphs))
                     ).astype(jnp.bfloat16)                        # [hd, Gp]

        # Fused local discriminator + JSD loss (padded rows carry graph_id = -1).
        gid_p = jnp.pad(graph_id.astype(jnp.int32), (0, np_ - n),
                        constant_values=-1).reshape(np_, 1)
        return fused_local_jsd_loss(slab, gid_p, kparams["local_d"], gt,
                                    n_real=n, g_real=num_graphs,
                                    row_tile=loss_row_tile, vmem_limit=budget)

    return forward


# ----------------------------------------------------------------------------
# Demo
# ----------------------------------------------------------------------------
if __name__ == "__main__":
    key = jax.random.PRNGKey(0)
    k_feat, k_params = jax.random.split(key)

    IN_DIM = 32          # fixed by the module (self.in_dim = 32)
    HID_DIM = 32
    N_LAYER = 2
    NUM_GRAPHS = 2
    NODES_PER_GRAPH = 8
    N = NUM_GRAPHS * NODES_PER_GRAPH

    # Node features [N, 32] and graph ids [N]
    feat = jax.random.normal(k_feat, (N, IN_DIM), jnp.float32)
    graph_id = jnp.repeat(jnp.arange(NUM_GRAPHS, dtype=jnp.int32),
                          NODES_PER_GRAPH)

    # Two ring graphs of 8 nodes each -> dense symmetric adjacency [N, N]
    adj = jnp.zeros((N, N), jnp.float32)
    for g in range(NUM_GRAPHS):
        base = g * NODES_PER_GRAPH
        for i in range(NODES_PER_GRAPH):
            a = base + i
            b = base + (i + 1) % NODES_PER_GRAPH
            adj = adj.at[a, b].set(1.0)
            adj = adj.at[b, a].set(1.0)

    params = init_infograph(k_params, IN_DIM, HID_DIM, N_LAYER)
    kparams = prepare_params(params, IN_DIM, HID_DIM, N_LAYER)

    forward = make_infograph_forward(IN_DIM, HID_DIM, N_LAYER, NUM_GRAPHS)
    loss = forward(adj, feat, graph_id, kparams)
    loss = jax.block_until_ready(loss)
    assert loss.shape == () and jnp.isfinite(loss)
    print("KERNEL_OK")
</pallas_src>

<mosaic_0001>
module attributes {stable_mosaic.version = 11 : i64} {
  func.func @kernel(%arg0: i32, %arg1: i32, %arg2: memref<16x16xbf16, #tpu.memory_space<vmem>>, %arg3: memref<16x128xf32, #tpu.memory_space<vmem>>, %arg4: memref<1x128x128xbf16, #tpu.memory_space<vmem>>, %arg5: memref<1x128x128xbf16, #tpu.memory_space<vmem>>, %arg6: memref<1x4x128xf32, #tpu.memory_space<vmem>>, %arg7: memref<16x128xf32, #tpu.memory_space<vmem>>, %arg8: memref<16x128xf32, #tpu.memory_space<vmem>>, %arg9: memref<16x128xf32, #tpu.memory_space<vmem>>) attributes {dimension_semantics = [#tpu.dimension_semantics<arbitrary>, #tpu.dimension_semantics<arbitrary>], iteration_bounds = array<i64: 2, 1>, scalar_prefetch = 0 : i64, scratch_operands = 2 : i64, tpu.core_type = #tpu.core_type<tc>, window_params = [{transform_indices = @transform_0, window_bounds = array<i64: 16, 16>}, {pipeline_mode = #tpu.pipeline_mode<synchronous>, transform_indices = @transform_1, window_bounds = array<i64: 16, 128>}, {transform_indices = @transform_2, window_bounds = array<i64: 1, 128, 128>}, {transform_indices = @transform_3, window_bounds = array<i64: 1, 128, 128>}, {transform_indices = @transform_4, window_bounds = array<i64: 1, 4, 128>}, {transform_indices = @transform_5, window_bounds = array<i64: 16, 128>}]} {
    %c0_i32 = arith.constant 0 : i32
    %0 = arith.cmpi eq, %arg0, %c0_i32 : i32
    %c0_i32_0 = arith.constant 0 : i32
    %1 = arith.cmpi eq, %arg1, %c0_i32_0 : i32
    %2 = arith.andi %0, %1 : i1
    %3 = arith.extui %2 : i1 to i32
    %c0_i32_1 = arith.constant 0 : i32
    %4 = arith.cmpi ne, %3, %c0_i32_1 : i32
    scf.if %4 {
      %c0_12 = arith.constant 0 : index
      %c0_13 = arith.constant 0 : index
      %21 = vector.load %arg3[%c0_12, %c0_13] : memref<16x128xf32, #tpu.memory_space<vmem>>, vector<16x128xf32>
      %c0_14 = arith.constant 0 : index
      %c0_15 = arith.constant 0 : index
      %22 = vector.load %arg8[%c0_14, %c0_15] : memref<16x128xf32, #tpu.memory_space<vmem>>, vector<16x128xf32>
      tpu.vector_store %arg8[%c0_14, %c0_15], %21 {strides = array<i32>} : memref<16x128xf32, #tpu.memory_space<vmem>>, vector<16x128xf32>,
    } else {
    }
    %c0_i32_2 = arith.constant 0 : i32
    %5 = arith.cmpi eq, %arg1, %c0_i32_2 : i32
    %6 = arith.extui %5 : i1 to i32
    %c0_i32_3 = arith.constant 0 : i32
    %7 = arith.cmpi ne, %6, %c0_i32_3 : i32
    scf.if %7 {
      %c0_12 = arith.constant 0 : index
      %c0_13 = arith.constant 0 : index
      %21 = vector.load %arg8[%c0_12, %c0_13] : memref<16x128xf32, #tpu.memory_space<vmem>>, vector<16x128xf32>
      %c0_14 = arith.constant 0 : index
      %c0_15 = arith.constant 0 : index
      %22 = vector.load %arg9[%c0_14, %c0_15] : memref<16x128xf32, #tpu.memory_space<vmem>>, vector<16x128xf32>
      tpu.vector_store %arg9[%c0_14, %c0_15], %21 {strides = array<i32>} : memref<16x128xf32, #tpu.memory_space<vmem>>, vector<16x128xf32>,
    } else {
    }
    %c16_i32 = arith.constant 16 : i32
    %8 = arith.muli %arg1, %c16_i32 : i32
    %9 = tpu.assume_multiple %8, 8 : i32
    %10 = arith.index_cast %9 : i32 to index
    %c0 = arith.constant 0 : index
    %11 = vector.load %arg8[%10, %c0] : memref<16x128xf32, #tpu.memory_space<vmem>>, vector<16x128xf32>
    %12 = arith.truncf %11 : vector<16x128xf32> to vector<16x128xbf16>
    %c0_4 = arith.constant 0 : index
    %c0_5 = arith.constant 0 : index
    %13 = vector.load %arg9[%c0_4, %c0_5] : memref<16x128xf32, #tpu.memory_space<vmem>>, vector<16x128xf32>
    %c0_6 = arith.constant 0 : index
    %c0_7 = arith.constant 0 : index
    %14 = vector.load %arg2[%c0_6, %c0_7] : memref<16x16xbf16, #tpu.memory_space<vmem>>, vector<16x16xbf16>
    %cst = arith.constant dense<0.000000e+00> : vector<16x128xf32>
    %15 = tpu.matmul %14, %12, %cst {dimension_numbers = #tpu.dot_dimension_numbers<[1], [0], [0], [1], [0, 0, 1, 1], [], []>} : vector<16x16xbf16>, vector<16x128xbf16>, vector<16x128xf32> -> vector<16x128xf32>
    %16 = arith.addf %13, %15 : vector<16x128xf32>
    %c0_8 = arith.constant 0 : index
    %c0_9 = arith.constant 0 : index
    %17 = vector.load %arg9[%c0_8, %c0_9] : memref<16x128xf32, #tpu.memory_space<vmem>>, vector<16x128xf32>
    tpu.vector_store %arg9[%c0_8, %c0_9], %16 {strides = array<i32>} : memref<16x128xf32, #tpu.memory_space<vmem>>, vector<16x128xf32>,
    %c0_i32_10 = arith.constant 0 : i32
    %18 = arith.cmpi eq, %arg1, %c0_i32_10 : i32
    %19 = arith.extui %18 : i1 to i32
    %c0_i32_11 = arith.constant 0 : i32
    %20 = arith.cmpi ne, %19, %c0_i32_11 : i32
    scf.if %20 {
      %c0_12 = arith.constant 0 : index
      %c0_13 = arith.constant 0 : index
      %21 = vector.load %arg9[%c0_12, %c0_13] : memref<16x128xf32, #tpu.memory_space<vmem>>, vector<16x128xf32>
      %c0_14 = arith.constant 0 : index
      %c0_15 = arith.constant 0 : index
      %c0_16 = arith.constant 0 : index
      %22 = vector.load %arg6[%c0_14, %c0_15, %c0_16] : memref<1x4x128xf32, #tpu.memory_space<vmem>>, vector<1x1x128xf32>
      %23 = vector.shape_cast %22 : vector<1x1x128xf32> to vector<1x128xf32>
      %c0_17 = arith.constant 0 : index
      %c1 = arith.constant 1 : index
      %c0_18 = arith.constant 0 : index
      %24 = vector.load %arg6[%c0_17, %c1, %c0_18] : memref<1x4x128xf32, #tpu.memory_space<vmem>>, vector<1x1x128xf32>
      %25 = vector.shape_cast %24 : vector<1x1x128xf32> to vector<1x128xf32>
      %c0_19 = arith.constant 0 : index
      %c2 = arith.constant 2 : index
      %c0_20 = arith.constant 0 : index
      %26 = vector.load %arg6[%c0_19, %c2, %c0_20] : memref<1x4x128xf32, #tpu.memory_space<vmem>>, vector<1x1x128xf32>
      %27 = vector.shape_cast %26 : vector<1x1x128xf32> to vector<1x128xf32>
      %c0_21 = arith.constant 0 : index
      %c3 = arith.constant 3 : index
      %c0_22 = arith.constant 0 : index
      %28 = vector.load %arg6[%c0_21, %c3, %c0_22] : memref<1x4x128xf32, #tpu.memory_space<vmem>>, vector<1x1x128xf32>
      %29 = vector.shape_cast %28 : vector<1x1x128xf32> to vector<1x128xf32>
      %30 = arith.truncf %21 : vector<16x128xf32> to vector<16x128xbf16>
      %c0_23 = arith.constant 0 : index
      %c0_24 = arith.constant 0 : index
      %c0_25 = arith.constant 0 : index
      %31 = vector.load %arg4[%c0_23, %c0_24, %c0_25] : memref<1x128x128xbf16, #tpu.memory_space<vmem>>, vector<1x128x128xbf16>
      %32 = vector.shape_cast %31 : vector<1x128x128xbf16> to vector<128x128xbf16>
      %cst_26 = arith.constant dense<0.000000e+00> : vector<16x128xf32>
      %33 = tpu.matmul %30, %32, %cst_26 {dimension_numbers = #tpu.dot_dimension_numbers<[1], [0], [0], [1], [0, 0, 1, 1], [], []>} : vector<16x128xbf16>, vector<128x128xbf16>, vector<16x128xf32> -> vector<16x128xf32>
      %34 = vector.broadcast %23 : vector<1x128xf32> to vector<16x128xf32>
      %35 = arith.addf %33, %34 : vector<16x128xf32>
      %cst_27 = arith.constant 0.000000e+00 : f32
      %36 = vector.broadcast %cst_27 : f32 to vector<16x128xf32>
      %37 = arith.maximumf %35, %36 : vector<16x128xf32>
      %38 = arith.truncf %37 : vector<16x128xf32> to vector<16x128xbf16>
      %c0_28 = arith.constant 0 : index
      %c0_29 = arith.constant 0 : index
      %c0_30 = arith.constant 0 : index
      %39 = vector.load %arg5[%c0_28, %c0_29, %c0_30] : memref<1x128x128xbf16, #tpu.memory_space<vmem>>, vector<1x128x128xbf16>
      %40 = vector.shape_cast %39 : vector<1x128x128xbf16> to vector<128x128xbf16>
      %cst_31 = arith.constant dense<0.000000e+00> : vector<16x128xf32>
      %41 = tpu.matmul %38, %40, %cst_31 {dimension_numbers = #tpu.dot_dimension_numbers<[1], [0], [0], [1], [0, 0, 1, 1], [], []>} : vector<16x128xbf16>, vector<128x128xbf16>, vector<16x128xf32> -> vector<16x128xf32>
      %42 = vector.broadcast %25 : vector<1x128xf32> to vector<16x128xf32>
      %43 = arith.addf %41, %42 : vector<16x128xf32>
      %cst_32 = arith.constant 0.000000e+00 : f32
      %44 = vector.broadcast %cst_32 : f32 to vector<16x128xf32>
      %45 = arith.maximumf %43, %44 : vector<16x128xf32>
      %cst_33 = arith.constant dense<0.000000e+00> : vector<128xf32>
      %46 = vector.multi_reduction <add>, %45, %cst_33 [0] : vector<16x128xf32> to vector<128xf32>
      %47 = vector.shape_cast %46 : vector<128xf32> to vector<1x128xf32>
      %cst_34 = arith.constant 6.250000e-02 : f32
      %48 = vector.broadcast %cst_34 : f32 to vector<1x128xf32>
      %49 = arith.mulf %47, %48 : vector<1x128xf32>
      %50 = arith.mulf %45, %45 : vector<16x128xf32>
      %cst_35 = arith.constant dense<0.000000e+00> : vector<128xf32>
      %51 = vector.multi_reduction <add>, %50, %cst_35 [0] : vector<16x128xf32> to vector<128xf32>
      %52 = vector.shape_cast %51 : vector<128xf32> to vector<1x128xf32>
      %cst_36 = arith.constant 6.250000e-02 : f32
      %53 = vector.broadcast %cst_36 : f32 to vector<1x128xf32>
      %54 = arith.mulf %52, %53 : vector<1x128xf32>
      %55 = arith.mulf %49, %49 : vector<1x128xf32>
      %56 = arith.subf %54, %55 : vector<1x128xf32>
      %cst_37 = arith.constant 0.000000e+00 : f32
      %57 = vector.broadcast %cst_37 : f32 to vector<1x128xf32>
      %58 = arith.maximumf %56, %57 : vector<1x128xf32>
      %59 = vector.broadcast %49 : vector<1x128xf32> to vector<16x128xf32>
      %60 = arith.subf %45, %59 : vector<16x128xf32>
      %cst_38 = arith.constant 9.99999974E-6 : f32
      %61 = vector.broadcast %cst_38 : f32 to vector<1x128xf32>
      %62 = arith.addf %58, %61 : vector<1x128xf32>
      %63 = math.rsqrt %62 : vector<1x128xf32>
      %64 = vector.broadcast %63 : vector<1x128xf32> to vector<16x128xf32>
      %65 = arith.mulf %60, %64 : vector<16x128xf32>
      %66 = vector.broadcast %27 : vector<1x128xf32> to vector<16x128xf32>
      %67 = arith.mulf %65, %66 : vector<16x128xf32>
      %68 = vector.broadcast %29 : vector<1x128xf32> to vector<16x128xf32>
      %69 = arith.addf %67, %68 : vector<16x128xf32>
      %c0_39 = arith.constant 0 : index
      %c0_40 = arith.constant 0 : index
      %70 = vector.load %arg7[%c0_39, %c0_40] : memref<16x128xf32, #tpu.memory_space<vmem>>, vector<16x128xf32>
      tpu.vector_store %arg7[%c0_39, %c0_40], %69 {strides = array<i32>} : memref<16x128xf32, #tpu.memory_space<vmem>>, vector<16x128xf32>,
      %c0_41 = arith.constant 0 : index
      %c0_42 = arith.constant 0 : index
      %71 = vector.load %arg8[%c0_41, %c0_42] : memref<16x128xf32, #tpu.memory_space<vmem>>, vector<16x128xf32>
      tpu.vector_store %arg8[%c0_41, %c0_42], %69 {strides = array<i32>} : memref<16x128xf32, #tpu.memory_space<vmem>>, vector<16x128xf32>,
    } else {
    }
    return
  }
  func.func @transform_0(%arg0: i32, %arg1: i32) -> (i32, i32) {
    %c0_i32 = arith.constant 0 : i32
    %c0_i32_0 = arith.constant 0 : i32
    return %c0_i32, %arg1 : i32, i32
  }
  func.func @transform_1(%arg0: i32, %arg1: i32) -> (i32, i32) {
    %c0_i32 = arith.constant 0 : i32
    %c0_i32_0 = arith.constant 0 : i32
    %c0_i32_1 = arith.constant 0 : i32
    return %c0_i32, %c0_i32_0 : i32, i32
  }
  func.func @transform_2(%arg0: i32, %arg1: i32) -> (i32, i32, i32) {
    %c0_i32 = arith.constant 0 : i32
    %c0_i32_0 = arith.constant 0 : i32
    %c0_i32_1 = arith.constant 0 : i32
    return %arg0, %c0_i32, %c0_i32_0 : i32, i32, i32
  }
  func.func @transform_3(%arg0: i32, %arg1: i32) -> (i32, i32, i32) {
    %c0_i32 = arith.constant 0 : i32
    %c0_i32_0 = arith.constant 0 : i32
    %c0_i32_1 = arith.constant 0 : i32
    return %arg0, %c0_i32, %c0_i32_0 : i32, i32, i32
  }
  func.func @transform_4(%arg0: i32, %arg1: i32) -> (i32, i32, i32) {
    %c0_i32 = arith.constant 0 : i32
    %c0_i32_0 = arith.constant 0 : i32
    %c0_i32_1 = arith.constant 0 : i32
    return %arg0, %c0_i32, %c0_i32_0 : i32, i32, i32
  }
  func.func @transform_5(%arg0: i32, %arg1: i32) -> (i32, i32) {
    %c0_i32 = arith.constant 0 : i32
    %c0_i32_0 = arith.constant 0 : i32
    return %c0_i32, %arg0 : i32, i32
  }
}

module attributes {stable_mosaic.version = 11 : i64} {
  func.func @_ffn_kernel(%arg0: memref<8x128xf32, #tpu.memory_space<vmem>>, %arg1: memref<128x256xbf16, #tpu.memory_space<vmem>>, %arg2: memref<1x256xf32, #tpu.memory_space<vmem>>, %arg3: memref<128x128xbf16, #tpu.memory_space<vmem>>, %arg4: memref<1x128xf32, #tpu.memory_space<vmem>>, %arg5: memref<128x128xbf16, #tpu.memory_space<vmem>>, %arg6: memref<1x128xf32, #tpu.memory_space<vmem>>, %arg7: memref<8x128xf32, #tpu.memory_space<vmem>>) attributes {dimension_semantics = [], scalar_prefetch = 0 : i64, scratch_operands = 0 : i64, tpu.core_type = #tpu.core_type<tc>} {
    %c0 = arith.constant 0 : index
    %c0_0 = arith.constant 0 : index
    %0 = vector.load %arg0[%c0, %c0_0] : memref<8x128xf32, #tpu.memory_space<vmem>>, vector<8x128xf32>
    %1 = arith.truncf %0 : vector<8x128xf32> to vector<8x128xbf16>
    %c0_1 = arith.constant 0 : index
    %c0_2 = arith.constant 0 : index
    %2 = vector.load %arg1[%c0_1, %c0_2] : memref<128x256xbf16, #tpu.memory_space<vmem>>, vector<128x256xbf16>
    %cst = arith.constant dense<0.000000e+00> : vector<8x256xf32>
    %3 = tpu.matmul %1, %2, %cst {dimension_numbers = #tpu.dot_dimension_numbers<[1], [0], [0], [1], [0, 0, 1, 1], [], []>} : vector<8x128xbf16>, vector<128x256xbf16>, vector<8x256xf32> -> vector<8x256xf32>
    %c0_3 = arith.constant 0 : index
    %c0_4 = arith.constant 0 : index
    %4 = vector.load %arg2[%c0_3, %c0_4] : memref<1x256xf32, #tpu.memory_space<vmem>>, vector<1x256xf32>
    %5 = vector.broadcast %4 : vector<1x256xf32> to vector<8x256xf32>
    %6 = arith.addf %3, %5 : vector<8x256xf32>
    %7 = vector.extract_strided_slice %6 {offsets = [0, 0], sizes = [8, 128], strides = [1, 1]} : vector<8x256xf32> to vector<8x128xf32>
    %cst_5 = arith.constant 0.000000e+00 : f32
    %8 = vector.broadcast %cst_5 : f32 to vector<8x128xf32>
    %9 = arith.maximumf %7, %8 : vector<8x128xf32>
    %10 = vector.extract_strided_slice %6 {offsets = [0, 128], sizes = [8, 128], strides = [1, 1]} : vector<8x256xf32> to vector<8x128xf32>
    %11 = arith.truncf %9 : vector<8x128xf32> to vector<8x128xbf16>
    %c0_6 = arith.constant 0 : index
    %c0_7 = arith.constant 0 : index
    %12 = vector.load %arg3[%c0_6, %c0_7] : memref<128x128xbf16, #tpu.memory_space<vmem>>, vector<128x128xbf16>
    %cst_8 = arith.constant dense<0.000000e+00> : vector<8x128xf32>
    %13 = tpu.matmul %11, %12, %cst_8 {dimension_numbers = #tpu.dot_dimension_numbers<[1], [0], [0], [1], [0, 0, 1, 1], [], []>} : vector<8x128xbf16>, vector<128x128xbf16>, vector<8x128xf32> -> vector<8x128xf32>
    %c0_9 = arith.constant 0 : index
    %c0_10 = arith.constant 0 : index
    %14 = vector.load %arg4[%c0_9, %c0_10] : memref<1x128xf32, #tpu.memory_space<vmem>>, vector<1x128xf32>
    %15 = vector.broadcast %14 : vector<1x128xf32> to vector<8x128xf32>
    %16 = arith.addf %13, %15 : vector<8x128xf32>
    %cst_11 = arith.constant 0.000000e+00 : f32
    %17 = vector.broadcast %cst_11 : f32 to vector<8x128xf32>
    %18 = arith.maximumf %16, %17 : vector<8x128xf32>
    %19 = arith.truncf %18 : vector<8x128xf32> to vector<8x128xbf16>
    %c0_12 = arith.constant 0 : index
    %c0_13 = arith.constant 0 : index
    %20 = vector.load %arg5[%c0_12, %c0_13] : memref<128x128xbf16, #tpu.memory_space<vmem>>, vector<128x128xbf16>
    %cst_14 = arith.constant dense<0.000000e+00> : vector<8x128xf32>
    %21 = tpu.matmul %19, %20, %cst_14 {dimension_numbers = #tpu.dot_dimension_numbers<[1], [0], [0], [1], [0, 0, 1, 1], [], []>} : vector<8x128xbf16>, vector<128x128xbf16>, vector<8x128xf32> -> vector<8x128xf32>
    %c0_15 = arith.constant 0 : index
    %c0_16 = arith.constant 0 : index
    %22 = vector.load %arg6[%c0_15, %c0_16] : memref<1x128xf32, #tpu.memory_space<vmem>>, vector<1x128xf32>
    %23 = vector.broadcast %22 : vector<1x128xf32> to vector<8x128xf32>
    %24 = arith.addf %21, %23 : vector<8x128xf32>
    %cst_17 = arith.constant 0.000000e+00 : f32
    %25 = vector.broadcast %cst_17 : f32 to vector<8x128xf32>
    %26 = arith.maximumf %24, %25 : vector<8x128xf32>
    %27 = arith.addf %26, %10 : vector<8x128xf32>
    %c0_18 = arith.constant 0 : index
    %c0_19 = arith.constant 0 : index
    %28 = vector.load %arg7[%c0_18, %c0_19] : memref<8x128xf32, #tpu.memory_space<vmem>>, vector<8x128xf32>
    tpu.vector_store %arg7[%c0_18, %c0_19], %27 {strides = array<i32>} : memref<8x128xf32, #tpu.memory_space<vmem>>, vector<8x128xf32>,
    return
  }
}

module attributes {stable_mosaic.version = 11 : i64} {
  func.func @kernel(%arg0: i32, %arg1: memref<16x256xf32, #tpu.memory_space<vmem>>, %arg2: memref<16x1xi32, #tpu.memory_space<vmem>>, %arg3: memref<256x256xbf16, #tpu.memory_space<vmem>>, %arg4: memref<1x256xf32, #tpu.memory_space<vmem>>, %arg5: memref<128x128xbf16, #tpu.memory_space<vmem>>, %arg6: memref<1x128xf32, #tpu.memory_space<vmem>>, %arg7: memref<128x128xbf16, #tpu.memory_space<vmem>>, %arg8: memref<1x128xf32, #tpu.memory_space<vmem>>, %arg9: memref<128x128xbf16, #tpu.memory_space<vmem>>, %arg10: memref<1xf32, #tpu.memory_space<smem>>, %arg11: memref<1xf32, #tpu.memory_space<smem>>) attributes {dimension_semantics = [#tpu.dimension_semantics<arbitrary>], iteration_bounds = array<i64: 1>, scalar_prefetch = 0 : i64, scratch_operands = 1 : i64, tpu.core_type = #tpu.core_type<tc>, window_params = [{transform_indices = @transform_0, window_bounds = array<i64: 16, 256>}, {transform_indices = @transform_1, window_bounds = array<i64: 16, 1>}, {pipeline_mode = #tpu.pipeline_mode<synchronous>, transform_indices = @transform_2, window_bounds = array<i64: 256, 256>}, {pipeline_mode = #tpu.pipeline_mode<synchronous>, transform_indices = @transform_3, window_bounds = array<i64: 1, 256>}, {pipeline_mode = #tpu.pipeline_mode<synchronous>, transform_indices = @transform_4, window_bounds = array<i64: 128, 128>}, {pipeline_mode = #tpu.pipeline_mode<synchronous>, transform_indices = @transform_5, window_bounds = array<i64: 1, 128>}, {pipeline_mode = #tpu.pipeline_mode<synchronous>, transform_indices = @transform_6, window_bounds = array<i64: 128, 128>}, {pipeline_mode = #tpu.pipeline_mode<synchronous>, transform_indices = @transform_7, window_bounds = array<i64: 1, 128>}, {pipeline_mode = #tpu.pipeline_mode<synchronous>, transform_indices = @transform_8, window_bounds = array<i64: 128, 128>}, {transform_indices = @transform_9, window_bounds = array<i64: 1>}]} {
    %c0_i32 = arith.constant 0 : i32
    %0 = arith.cmpi eq, %arg0, %c0_i32 : i32
    %1 = arith.extui %0 : i1 to i32
    %c0_i32_0 = arith.constant 0 : i32
    %2 = arith.cmpi ne, %1, %c0_i32_0 : i32
    scf.if %2 {
      %cst_41 = arith.constant 0.000000e+00 : f32
      %c0_42 = arith.constant 0 : index
      %87 = memref.load %arg11[%c0_42] : memref<1xf32, #tpu.memory_space<smem>>
      memref.store %cst_41, %arg11[%c0_42] : memref<1xf32, #tpu.memory_space<smem>>
    } else {
    }
    %c0 = arith.constant 0 : index
    %c0_1 = arith.constant 0 : index
    %3 = vector.load %arg1[%c0, %c0_1] : memref<16x256xf32, #tpu.memory_space<vmem>>, vector<16x256xf32>
    %4 = arith.truncf %3 : vector<16x256xf32> to vector<16x256xbf16>
    %c0_2 = arith.constant 0 : index
    %c0_3 = arith.constant 0 : index
    %5 = vector.load %arg3[%c0_2, %c0_3] : memref<256x256xbf16, #tpu.memory_space<vmem>>, vector<256x256xbf16>
    %cst = arith.constant dense<0.000000e+00> : vector<16x256xf32>
    %6 = tpu.matmul %4, %5, %cst {dimension_numbers = #tpu.dot_dimension_numbers<[1], [0], [0], [1], [0, 0, 1, 1], [], []>} : vector<16x256xbf16>, vector<256x256xbf16>, vector<16x256xf32> -> vector<16x256xf32>
    %c0_4 = arith.constant 0 : index
    %c0_5 = arith.constant 0 : index
    %7 = vector.load %arg4[%c0_4, %c0_5] : memref<1x256xf32, #tpu.memory_space<vmem>>, vector<1x256xf32>
    %8 = vector.broadcast %7 : vector<1x256xf32> to vector<16x256xf32>
    %9 = arith.addf %6, %8 : vector<16x256xf32>
    %10 = vector.extract_strided_slice %9 {offsets = [0, 0], sizes = [16, 128], strides = [1, 1]} : vector<16x256xf32> to vector<16x128xf32>
    %cst_6 = arith.constant 0.000000e+00 : f32
    %11 = vector.broadcast %cst_6 : f32 to vector<16x128xf32>
    %12 = arith.maximumf %10, %11 : vector<16x128xf32>
    %13 = vector.extract_strided_slice %9 {offsets = [0, 128], sizes = [16, 128], strides = [1, 1]} : vector<16x256xf32> to vector<16x128xf32>
    %14 = arith.truncf %12 : vector<16x128xf32> to vector<16x128xbf16>
    %c0_7 = arith.constant 0 : index
    %c0_8 = arith.constant 0 : index
    %15 = vector.load %arg5[%c0_7, %c0_8] : memref<128x128xbf16, #tpu.memory_space<vmem>>, vector<128x128xbf16>
    %cst_9 = arith.constant dense<0.000000e+00> : vector<16x128xf32>
    %16 = tpu.matmul %14, %15, %cst_9 {dimension_numbers = #tpu.dot_dimension_numbers<[1], [0], [0], [1], [0, 0, 1, 1], [], []>} : vector<16x128xbf16>, vector<128x128xbf16>, vector<16x128xf32> -> vector<16x128xf32>
    %c0_10 = arith.constant 0 : index
    %c0_11 = arith.constant 0 : index
    %17 = vector.load %arg6[%c0_10, %c0_11] : memref<1x128xf32, #tpu.memory_space<vmem>>, vector<1x128xf32>
    %18 = vector.broadcast %17 : vector<1x128xf32> to vector<16x128xf32>
    %19 = arith.addf %16, %18 : vector<16x128xf32>
    %cst_12 = arith.constant 0.000000e+00 : f32
    %20 = vector.broadcast %cst_12 : f32 to vector<16x128xf32>
    %21 = arith.maximumf %19, %20 : vector<16x128xf32>
    %22 = arith.truncf %21 : vector<16x128xf32> to vector<16x128xbf16>
    %c0_13 = arith.constant 0 : index
    %c0_14 = arith.constant 0 : index
    %23 = vector.load %arg7[%c0_13, %c0_14] : memref<128x128xbf16, #tpu.memory_space<vmem>>, vector<128x128xbf16>
    %cst_15 = arith.constant dense<0.000000e+00> : vector<16x128xf32>
    %24 = tpu.matmul %22, %23, %cst_15 {dimension_numbers = #tpu.dot_dimension_numbers<[1], [0], [0], [1], [0, 0, 1, 1], [], []>} : vector<16x128xbf16>, vector<128x128xbf16>, vector<16x128xf32> -> vector<16x128xf32>
    %c0_16 = arith.constant 0 : index
    %c0_17 = arith.constant 0 : index
    %25 = vector.load %arg8[%c0_16, %c0_17] : memref<1x128xf32, #tpu.memory_space<vmem>>, vector<1x128xf32>
    %26 = vector.broadcast %25 : vector<1x128xf32> to vector<16x128xf32>
    %27 = arith.addf %24, %26 : vector<16x128xf32>
    %cst_18 = arith.constant 0.000000e+00 : f32
    %28 = vector.broadcast %cst_18 : f32 to vector<16x128xf32>
    %29 = arith.maximumf %27, %28 : vector<16x128xf32>
    %30 = arith.addf %29, %13 : vector<16x128xf32>
    %31 = arith.truncf %30 : vector<16x128xf32> to vector<16x128xbf16>
    %c0_19 = arith.constant 0 : index
    %c0_20 = arith.constant 0 : index
    %32 = vector.load %arg9[%c0_19, %c0_20] : memref<128x128xbf16, #tpu.memory_space<vmem>>, vector<128x128xbf16>
    %cst_21 = arith.constant dense<0.000000e+00> : vector<16x128xf32>
    %33 = tpu.matmul %31, %32, %cst_21 {dimension_numbers = #tpu.dot_dimension_numbers<[1], [0], [0], [1], [0, 0, 1, 1], [], []>} : vector<16x128xbf16>, vector<128x128xbf16>, vector<16x128xf32> -> vector<16x128xf32>
    %c0_22 = arith.constant 0 : index
    %c0_23 = arith.constant 0 : index
    %34 = vector.load %arg2[%c0_22, %c0_23] : memref<16x1xi32, #tpu.memory_space<vmem>>, vector<16x1xi32>
    %35 = tpu.iota {dimensions = array<i32: 1>} : vector<16x128xi32>
    %c0_i32_24 = arith.constant 0 : i32
    %36 = vector.broadcast %c0_i32_24 : i32 to vector<16x1xi32>
    %37 = arith.cmpi sge, %34, %36 : vector<16x1xi32>
    %38 = vector.broadcast %34 : vector<16x1xi32> to vector<16x128xi32>
    %39 = arith.cmpi eq, %35, %38 : vector<16x128xi32>
    %40 = vector.broadcast %37 : vector<16x1xi1> to vector<16x128xi1>
    %41 = arith.andi %39, %40 : vector<16x128xi1>
    %42 = vector.broadcast %34 : vector<16x1xi32> to vector<16x128xi32>
    %43 = arith.cmpi ne, %35, %42 : vector<16x128xi32>
    %44 = vector.broadcast %37 : vector<16x1xi1> to vector<16x128xi1>
    %45 = arith.andi %43, %44 : vector<16x128xi1>
    %c2_i32 = arith.constant 2 : i32
    %46 = vector.broadcast %c2_i32 : i32 to vector<16x128xi32>
    %47 = arith.cmpi slt, %35, %46 : vector<16x128xi32>
    %48 = arith.andi %45, %47 : vector<16x128xi1>
    %cst_25 = arith.constant 0.000000e+00 : f32
    %49 = vector.broadcast %cst_25 : f32 to vector<16x128xf32>
    %50 = arith.subf %49, %33 : vector<16x128xf32>
    %cst_26 = arith.constant 0.000000e+00 : f32
    %51 = vector.broadcast %cst_26 : f32 to vector<16x128xf32>
    %52 = arith.maximumf %50, %51 : vector<16x128xf32>
    %53 = math.absf %33 : vector<16x128xf32>
    %cst_27 = arith.constant 0.000000e+00 : f32
    %54 = vector.broadcast %cst_27 : f32 to vector<16x128xf32>
    %55 = arith.subf %54, %53 : vector<16x128xf32>
    %56 = math.exp %55 : vector<16x128xf32>
    %cst_28 = arith.constant 1.000000e+00 : f32
    %57 = vector.broadcast %cst_28 : f32 to vector<16x128xf32>
    %58 = arith.addf %57, %56 : vector<16x128xf32>
    %59 = math.log %58 : vector<16x128xf32>
    %60 = arith.addf %52, %59 : vector<16x128xf32>
    %cst_29 = arith.constant 0.693147182 : f32
    %61 = vector.broadcast %cst_29 : f32 to vector<16x128xf32>
    %62 = arith.subf %61, %60 : vector<16x128xf32>
    %cst_30 = arith.constant 0.000000e+00 : f32
    %63 = vector.broadcast %cst_30 : f32 to vector<16x128xf32>
    %64 = arith.select %41, %62, %63 : vector<16x128xi1>, vector<16x128xf32>
    %65 = vector.shape_cast %64 : vector<16x128xf32> to vector<1x16x128xf32>
    %cst_31 = arith.constant dense<0.000000e+00> : vector<1xf32>
    %66 = vector.multi_reduction <add>, %65, %cst_31 [1, 2] : vector<1x16x128xf32> to vector<1xf32>
    %67 = vector.shape_cast %66 : vector<1xf32> to vector<1x1x1xf32>
    %68 = vector.extract %67[0, 0, 0] : f32 from vector<1x1x1xf32>
    %cst_32 = arith.constant 6.250000e-02 : f32
    %69 = arith.mulf %68, %cst_32 : f32
    %70 = arith.addf %60, %33 : vector<16x128xf32>
    %cst_33 = arith.constant 0.693147182 : f32
    %71 = vector.broadcast %cst_33 : f32 to vector<16x128xf32>
    %72 = arith.subf %70, %71 : vector<16x128xf32>
    %cst_34 = arith.constant 0.000000e+00 : f32
    %73 = vector.broadcast %cst_34 : f32 to vector<16x128xf32>
    %74 = arith.select %48, %72, %73 : vector<16x128xi1>, vector<16x128xf32>
    %75 = vector.shape_cast %74 : vector<16x128xf32> to vector<1x16x128xf32>
    %cst_35 = arith.constant dense<0.000000e+00> : vector<1xf32>
    %76 = vector.multi_reduction <add>, %75, %cst_35 [1, 2] : vector<1x16x128xf32> to vector<1xf32>
    %77 = vector.shape_cast %76 : vector<1xf32> to vector<1x1x1xf32>
    %78 = vector.extract %77[0, 0, 0] : f32 from vector<1x1x1xf32>
    %cst_36 = arith.constant 6.250000e-02 : f32
    %79 = arith.mulf %78, %cst_36 : f32
    %c0_37 = arith.constant 0 : index
    %80 = memref.load %arg11[%c0_37] : memref<1xf32, #tpu.memory_space<smem>>
    %81 = arith.subf %79, %69 : f32
    %82 = arith.addf %80, %81 : f32
    %c0_38 = arith.constant 0 : index
    %83 = memref.load %arg11[%c0_38] : memref<1xf32, #tpu.memory_space<smem>>
    memref.store %82, %arg11[%c0_38] : memref<1xf32, #tpu.memory_space<smem>>
    %c0_i32_39 = arith.constant 0 : i32
    %84 = arith.cmpi eq, %arg0, %c0_i32_39 : i32
    %85 = arith.extui %84 : i1 to i32
    %c0_i32_40 = arith.constant 0 : i32
    %86 = arith.cmpi ne, %85, %c0_i32_40 : i32
    scf.if %86 {
      %c0_41 = arith.constant 0 : index
      %87 = memref.load %arg11[%c0_41] : memref<1xf32, #tpu.memory_space<smem>>
      %c0_42 = arith.constant 0 : index
      %88 = memref.load %arg10[%c0_42] : memref<1xf32, #tpu.memory_space<smem>>
      memref.store %87, %arg10[%c0_42] : memref<1xf32, #tpu.memory_space<smem>>
    } else {
    }
    return
  }
  func.func @transform_0(%arg0: i32) -> (i32, i32) {
    %c0_i32 = arith.constant 0 : i32
    %c0_i32_0 = arith.constant 0 : i32
    return %arg0, %c0_i32 : i32, i32
  }
  func.func @transform_1(%arg0: i32) -> (i32, i32) {
    %c0_i32 = arith.constant 0 : i32
    %c0_i32_0 = arith.constant 0 : i32
    return %arg0, %c0_i32 : i32, i32
  }
  func.func @transform_2(%arg0: i32) -> (i32, i32) {
    %c0_i32 = arith.constant 0 : i32
    %c0_i32_0 = arith.constant 0 : i32
    %c0_i32_1 = arith.constant 0 : i32
    return %c0_i32, %c0_i32_0 : i32, i32
  }
  func.func @transform_3(%arg0: i32) -> (i32, i32) {
    %c0_i32 = arith.constant 0 : i32
    %c0_i32_0 = arith.constant 0 : i32
    %c0_i32_1 = arith.constant 0 : i32
    return %c0_i32, %c0_i32_0 : i32, i32
  }
  func.func @transform_4(%arg0: i32) -> (i32, i32) {
    %c0_i32 = arith.constant 0 : i32
    %c0_i32_0 = arith.constant 0 : i32
    %c0_i32_1 = arith.constant 0 : i32
    return %c0_i32, %c0_i32_0 : i32, i32
  }
  func.func @transform_5(%arg0: i32) -> (i32, i32) {
    %c0_i32 = arith.constant 0 : i32
    %c0_i32_0 = arith.constant 0 : i32
    %c0_i32_1 = arith.constant 0 : i32
    return %c0_i32, %c0_i32_0 : i32, i32
  }
  func.func @transform_6(%arg0: i32) -> (i32, i32) {
    %c0_i32 = arith.constant 0 : i32
    %c0_i32_0 = arith.constant 0 : i32
    %c0_i32_1 = arith.constant 0 : i32
    return %c0_i32, %c0_i32_0 : i32, i32
  }
  func.func @transform_7(%arg0: i32) -> (i32, i32) {
    %c0_i32 = arith.constant 0 : i32
    %c0_i32_0 = arith.constant 0 : i32
    %c0_i32_1 = arith.constant 0 : i32
    return %c0_i32, %c0_i32_0 : i32, i32
  }
  func.func @transform_8(%arg0: i32) -> (i32, i32) {
    %c0_i32 = arith.constant 0 : i32
    %c0_i32_0 = arith.constant 0 : i32
    %c0_i32_1 = arith.constant 0 : i32
    return %c0_i32, %c0_i32_0 : i32, i32
  }
  func.func @transform_9(%arg0: i32) -> i32 {
    %c0_i32 = arith.constant 0 : i32
    %c0_i32_0 = arith.constant 0 : i32
    return %c0_i32 : i32
  }
}

</mosaic_0001>

<llo_original>
// kernel: forward.3
$region0: #{forward.3}
  #allocation0 [shape = 'u32[]', space=smem, size = 0x4, offset = 0x4, fixed_abs, tag = 'smem constant byte address 0x4 - core index']
  #allocation1 [shape = 'u32[144,128]{1,0:T(1,128)}', space=vmem, size = 0x12000, scoped, tag = 'internal scratch']
  #allocation2 [shape = 'f32[16,128]{1,0:T(8,128)}', space=vmem, size = 0x2000, scoped, tag = 'scratch operand']
  #allocation3 [shape = 'f32[16,128]{1,0:T(8,128)}', space=vmem, size = 0x2000, scoped, tag = 'scratch operand']
  %s0 = inlined_call_operand.vmem [shape: bf16[16,16], index: 0, kind: input, shape index: {}]
  %s1 = inlined_call_operand.vmem [shape: f32[16,128], index: 1, kind: input, shape index: {}]
  %s2 = inlined_call_operand.hbm [shape: bf16[2,128,128], index: 2, kind: input, shape index: {}]
  %s3 = inlined_call_operand.hbm [shape: bf16[2,128,128], index: 3, kind: input, shape index: {}]
  %s4 = inlined_call_operand.vmem [shape: f32[2,4,128], index: 4, kind: input, shape index: {}]
  %s5 = inlined_call_operand.vmem [shape: f32[16,256], index: 5, kind: output, shape index: {}]
  %s6 = sld [smem:[#allocation0]]
  $region107: #{forward.3} parent=0
    _
  %s8 = ssub.s32 1, %s6
  %s9 = scalar_select 0, %s8, %s6
  $region1: #{forward.3} parent=0
    #allocation4 [shape = 'u8[65536]{0}', space=vmem, size = 0x10000, scoped, tag = 'input window, operand 2']
    #allocation5 [shape = 's32[2]{0}', space=sflag, size = 0x8, scoped, tag = 'scoped memory for forward.3']
    #allocation6 [shape = 'u8[65536]{0}', space=vmem, size = 0x10000, scoped, tag = 'input window, operand 3']
    #allocation7 [shape = 's32[2]{0}', space=sflag, size = 0x8, scoped, tag = 'scoped memory for forward.3']
    #allocation8 [shape = 'u8[16384]{0}', space=vmem, size = 0x4000, scoped, tag = 'output window, operand 0']
    %10 = vsyncpa [#allocation5], 0
    %s11 = scalar_lea.sflag [#allocation5], 1
    %12 = vsyncpa %s11, 0
    %13 = vsyncpa [#allocation7], 0
    %s14 = scalar_lea.sflag [#allocation7], 1
    %15 = vsyncpa %s14, 0
    loop: start=0, step=1, limit=4
    $region2: #{forward.3} parent=1 // loop_pre_header
      _
    $region3: #{forward.3} parent=1 // loop_header
      %s17 = sphi 0, %s21
      %p18 = scmp.ge.s32.totalorder %s17, 4
      %s24 = sphi 0, %s36
      %s25 = sphi 0, %s32
      %s26 = sphi 0, %s24
      %s27 = sphi 0, %s25
      %s28 = sphi 0, %s26
      %s29 = sphi 0, %s27
      %s39 = sphi 0, %s41
      %s42 = sphi 0, %s39
      %s43 = sphi 0, %s42
      %s59 = sphi 0, %s43
      %s63 = sphi 0, %s63
      %s65 = sphi 0, %s63
      %s66 = sphi 0, %s65
      %s80 = sphi 0, %s66
      %s86 = sphi 0, %s88
      %s89 = sphi 0, %s86
      %s90 = sphi 0, %s89
      %s106 = sphi 0, %s90
      %s112 = sphi 0, %s114
      %s115 = sphi 0, %s112
      %s116 = sphi 0, %s115
      %s132 = sphi 0, %s116
      %s138 = sphi 0, %s140
      %s141 = sphi 0, %s138
      %s142 = sphi 0, %s141
      %s158 = sphi 0, %s142
      %s164 = sphi 0, %s166
      %s167 = sphi 0, %s164
      %s168 = sphi 0, %s167
      %s184 = sphi 0, %s168
    $region4: #{forward.3} parent=1 // loop_header_branch
      %20 = sbr.rel (%p18) target = $region8
    $region5: #{forward.3} parent=1 // loop_body
      %s22 = ssub.s32 %s17, 1
      %s23 = ssub.s32 %s17, 2
      %s30 = sadd.s32 1, %s25
      %p31 = scmp.ge.s32.totalorder %s30, 1
      %s32 = scalar_select %p31, 0, %s30
      %s33 = sadd.s32 1, %s24
      %s34 = scalar_select %p31, %s33, %s24
      %p35 = scmp.ge.s32.totalorder %s34, 2
      %s36 = scalar_select %p35, 0, %s34
      %s37 = ssub.s32 %s25, %s32
      %p38 = scmp.eq.s32.totalorder %s37, 0
      %s40 = sadd.s32 %s39, 1
      %s41 = scalar_select %p38, %s39, %s40
      %p44 = pneg %p38
      %p45 = scmp.eq.s32.totalorder %s17, 1
      %p46 = por %p44, %p45
      %p47 = scmp.ne.s32.totalorder %s39, %s42
      %p48 = scmp.eq.s32.totalorder %s17, 0
      %p49 = por %p47, %p48
      %p50 = scmp.ne.s32.totalorder %s39, %s42
      %p51 = scmp.eq.s32.totalorder %s22, 1
      %p52 = por %p50, %p51
      %p53 = scmp.ne.s32.totalorder %s42, %s43
      %p54 = scmp.eq.s32.totalorder %s22, 0
      %p55 = por %p53, %p54
      %p56 = scmp.ne.s32.totalorder %s42, %s43
      %p57 = scmp.eq.s32.totalorder %s23, 1
      %p58 = por %p56, %p57
      %p60 = scmp.ne.s32.totalorder %s43, %s59
      %p61 = scmp.eq.s32.totalorder %s23, 0
      %p62 = por %p60, %p61
      %s64 = sadd.s32 %s63, 1
      %p67 = scmp.eq.s32.totalorder %s17, 1
      %p68 = scmp.ne.s32.totalorder %s63, %s65
      %p69 = scmp.eq.s32.totalorder %s17, 0
      %p70 = por %p68, %p69
      %p71 = scmp.ne.s32.totalorder %s63, %s65
      %p72 = scmp.eq.s32.totalorder %s22, 1
      %p73 = por %p71, %p72
      %p74 = scmp.ne.s32.totalorder %s65, %s66
      %p75 = scmp.eq.s32.totalorder %s22, 0
      %p76 = por %p74, %p75
      %p77 = scmp.ne.s32.totalorder %s65, %s66
      %p78 = scmp.eq.s32.totalorder %s23, 1
      %p79 = por %p77, %p78
      %p81 = scmp.ne.s32.totalorder %s66, %s80
      %p82 = scmp.eq.s32.totalorder %s23, 0
      %p83 = por %p81, %p82
      %s84 = ssub.s32 %s24, %s36
      %p85 = scmp.eq.s32.totalorder %s84, 0
      %s87 = sadd.s32 %s86, 1
      %s88 = scalar_select %p85, %s86, %s87
      %p91 = pneg %p85
      %p92 = scmp.eq.s32.totalorder %s17, 1
      %p93 = por %p91, %p92
      %p94 = scmp.ne.s32.totalorder %s86, %s89
      %p95 = scmp.eq.s32.totalorder %s17, 0
      %p96 = por %p94, %p95
      %p97 = scmp.ne.s32.totalorder %s86, %s89
      %p98 = scmp.eq.s32.totalorder %s22, 1
      %p99 = por %p97, %p98
      %p100 = scmp.ne.s32.totalorder %s89, %s90
      %p101 = scmp.eq.s32.totalorder %s22, 0
      %p102 = por %p100, %p101
      %p103 = scmp.ne.s32.totalorder %s89, %s90
      %p104 = scmp.eq.s32.totalorder %s23, 1
      %p105 = por %p103, %p104
      %p107 = scmp.ne.s32.totalorder %s90, %s106
      %p108 = scmp.eq.s32.totalorder %s23, 0
      %p109 = por %p107, %p108
      %s110 = ssub.s32 %s24, %s36
      %p111 = scmp.eq.s32.totalorder %s110, 0
      %s113 = sadd.s32 %s112, 1
      %s114 = scalar_select %p111, %s112, %s113
      %p117 = pneg %p111
      %p118 = scmp.eq.s32.totalorder %s17, 1
      %p119 = por %p117, %p118
      %p120 = scmp.ne.s32.totalorder %s112, %s115
      %p121 = scmp.eq.s32.totalorder %s17, 0
      %p122 = por %p120, %p121
      %p123 = scmp.ne.s32.totalorder %s112, %s115
      %p124 = scmp.eq.s32.totalorder %s22, 1
      %p125 = por %p123, %p124
      %p126 = scmp.ne.s32.totalorder %s115, %s116
      %p127 = scmp.eq.s32.totalorder %s22, 0
      %p128 = por %p126, %p127
      %p129 = scmp.ne.s32.totalorder %s115, %s116
      %p130 = scmp.eq.s32.totalorder %s23, 1
      %p131 = por %p129, %p130
      %p133 = scmp.ne.s32.totalorder %s116, %s132
      %p134 = scmp.eq.s32.totalorder %s23, 0
      %p135 = por %p133, %p134
      %s136 = ssub.s32 %s24, %s36
      %p137 = scmp.eq.s32.totalorder %s136, 0
      %s139 = sadd.s32 %s138, 1
      %s140 = scalar_select %p137, %s138, %s139
      %p143 = pneg %p137
      %p144 = scmp.eq.s32.totalorder %s17, 1
      %p145 = por %p143, %p144
      %p146 = scmp.ne.s32.totalorder %s138, %s141
      %p147 = scmp.eq.s32.totalorder %s17, 0
      %p148 = por %p146, %p147
      %p149 = scmp.ne.s32.totalorder %s138, %s141
      %p150 = scmp.eq.s32.totalorder %s22, 1
      %p151 = por %p149, %p150
      %p152 = scmp.ne.s32.totalorder %s141, %s142
      %p153 = scmp.eq.s32.totalorder %s22, 0
      %p154 = por %p152, %p153
      %p155 = scmp.ne.s32.totalorder %s141, %s142
      %p156 = scmp.eq.s32.totalorder %s23, 1
      %p157 = por %p155, %p156
      %p159 = scmp.ne.s32.totalorder %s142, %s158
      %p160 = scmp.eq.s32.totalorder %s23, 0
      %p161 = por %p159, %p160
      %s162 = ssub.s32 %s24, %s36
      %p163 = scmp.eq.s32.totalorder %s162, 0
      %s165 = sadd.s32 %s164, 1
      %s166 = scalar_select %p163, %s164, %s165
      %p169 = pneg %p163
      %p170 = scmp.eq.s32.totalorder %s17, 1
      %p171 = por %p169, %p170
      %p172 = scmp.ne.s32.totalorder %s164, %s167
      %p173 = scmp.eq.s32.totalorder %s17, 0
      %p174 = por %p172, %p173
      %p175 = scmp.ne.s32.totalorder %s164, %s167
      %p176 = scmp.eq.s32.totalorder %s22, 1
      %p177 = por %p175, %p176
      %p178 = scmp.ne.s32.totalorder %s167, %s168
      %p179 = scmp.eq.s32.totalorder %s22, 0
      %p180 = por %p178, %p179
      %p181 = scmp.ne.s32.totalorder %s167, %s168
      %p182 = scmp.eq.s32.totalorder %s23, 1
      %p183 = por %p181, %p182
      %p185 = scmp.ne.s32.totalorder %s168, %s184
      %p186 = scmp.eq.s32.totalorder %s23, 0
      %p187 = por %p185, %p186
      %p188 = scmp.le.s32.totalorder 1, %s17
      %p189 = scmp.lt.s32.totalorder %s17, 3
      %p190 = pnand %p188, %p189
      %p191 = pneg %p190
      // Predicated region
      $region9: #{forward.3} parent=5 // pred_check
        _
      $region10: #{forward.3} parent=5 // pred_check_branch
        %193 = sbr.rel (%p190) target = $region12
      $region11: #{forward.3} parent=5 // pred_region
        %s194 = ssub.s32 %s17, 1
        // Predicated region
        $region13: #{forward.3} parent=11 // pred_check
          %p195 = pneg %p55
        $region14: #{forward.3} parent=11 // pred_check_branch
          %197 = sbr.rel (%p195) target = $region16
        $region15: #{forward.3} parent=11 // pred_region
          %p198 = scmp.lt.s32.totalorder %s27, 0
          %s199 = scalar_select %p198, %s27, 0
          %s200 = smul.addr %s199, 4
          %s201 = scalar_lea.vmem %s0, %s200
        $region16: #{forward.3} parent=11 // pred_fallthru
          _
        // Predicated region
        $region17: #{forward.3} parent=11 // pred_check
          %p202 = pneg %p76
        $region18: #{forward.3} parent=11 // pred_check_branch
          %204 = sbr.rel (%p202) target = $region20
        $region19: #{forward.3} parent=11 // pred_region
          _
        $region20: #{forward.3} parent=11 // pred_fallthru
          _
      $region12: #{forward.3} parent=5 // pred_fallthru
        _
      %p205 = scmp.lt.s32.totalorder %s17, 2
      // Predicated region
      $region21: #{forward.3} parent=5 // pred_check
        %p206 = pneg %p205
      $region22: #{forward.3} parent=5 // pred_check_branch
        %208 = sbr.rel (%p206) target = $region24
      $region23: #{forward.3} parent=5 // pred_region
        // Predicated region
        $region25: #{forward.3} parent=23 // pred_check
          %p209 = pneg %p96
        $region26: #{forward.3} parent=23 // pred_check_branch
          %211 = sbr.rel (%p209) target = $region28
        $region27: #{forward.3} parent=23 // pred_region
          %s212 = sand.u32 %s86, 1
          %s213 = scalar_lea.sflag [#allocation5], %s212
          %s214 = sand.u32 %s86, 1
          %s215 = smul.addr %s214, 64
          %s216 = scalar_lea.vmem [#allocation4], %s215
          %s218 = ssub.s32 1024, 1024
          %219 = vsyncadd %s213, %s218
          %s220 = smul.addr %s24, 16
          %s221 = smul.addr %s220, 64
          %s222 = scalar_lea.hbm %s2, %s221
          %s223 = sshll.u32 %s216, 4
          %s224 = int_to_ptr.vmem [resolvable:$true] %s223
          %229 = dma.hbm_to_vmem [thread:$0]  %s222, 1024, %s224, %s213, 64, 64, 4
        $region28: #{forward.3} parent=23 // pred_fallthru
          _
        // Predicated region
        $region29: #{forward.3} parent=23 // pred_check
          %p230 = pneg %p122
        $region30: #{forward.3} parent=23 // pred_check_branch
          %232 = sbr.rel (%p230) target = $region32
        $region31: #{forward.3} parent=23 // pred_region
          %s233 = sand.u32 %s112, 1
          %s234 = scalar_lea.sflag [#allocation7], %s233
          %s235 = sand.u32 %s112, 1
          %s236 = smul.addr %s235, 64
          %s237 = scalar_lea.vmem [#allocation6], %s236
          %s239 = ssub.s32 1024, 1024
          %240 = vsyncadd %s234, %s239
          %s241 = smul.addr %s24, 16
          %s242 = smul.addr %s241, 64
          %s243 = scalar_lea.hbm %s3, %s242
          %s244 = sshll.u32 %s237, 4
          %s245 = int_to_ptr.vmem [resolvable:$true] %s244
          %250 = dma.hbm_to_vmem [thread:$0]  %s243, 1024, %s245, %s234, 64, 64, 4
        $region32: #{forward.3} parent=23 // pred_fallthru
          _
        // Predicated region
        $region33: #{forward.3} parent=23 // pred_check
          %p251 = pneg %p148
        $region34: #{forward.3} parent=23 // pred_check_branch
          %253 = sbr.rel (%p251) target = $region36
        $region35: #{forward.3} parent=23 // pred_region
          %p254 = scmp.lt.s32.totalorder %s24, 1
          %s255 = scalar_select %p254, %s24, 1
          %s256 = smul.addr %s255, 4
          %s257 = scalar_lea.vmem %s4, %s256
        $region36: #{forward.3} parent=23 // pred_fallthru
          _
      $region24: #{forward.3} parent=5 // pred_fallthru
        _
      %p258 = scmp.le.s32.totalorder 1, %s17
      %p259 = scmp.lt.s32.totalorder %s17, 3
      %p260 = pnand %p258, %p259
      %p261 = pneg %p260
      // Predicated region
      $region37: #{forward.3} parent=5 // pred_check
        _
      $region38: #{forward.3} parent=5 // pred_check_branch
        %263 = sbr.rel (%p260) target = $region40
      $region39: #{forward.3} parent=5 // pred_region
        %s264 = ssub.s32 %s17, 1
        %s265 = sand.u32 %s89, 1
        %s266 = scalar_lea.sflag [#allocation5], %s265
        %s267 = sand.u32 %s89, 1
        %s268 = smul.addr %s267, 64
        %s269 = scalar_lea.vmem [#allocation4], %s268
        // Predicated region
        $region41: #{forward.3} parent=39 // pred_check
          %p270 = pneg %p102
        $region42: #{forward.3} parent=39 // pred_check_branch
          %272 = sbr.rel (%p270) target = $region44
        $region43: #{forward.3} parent=39 // pred_region
          %273 = dma.done %s266, 1024
        $region44: #{forward.3} parent=39 // pred_fallthru
          _
        %s274 = sand.u32 %s115, 1
        %s275 = scalar_lea.sflag [#allocation7], %s274
        %s276 = sand.u32 %s115, 1
        %s277 = smul.addr %s276, 64
        %s278 = scalar_lea.vmem [#allocation6], %s277
        // Predicated region
        $region45: #{forward.3} parent=39 // pred_check
          %p279 = pneg %p128
        $region46: #{forward.3} parent=39 // pred_check_branch
          %281 = sbr.rel (%p279) target = $region48
        $region47: #{forward.3} parent=39 // pred_region
          %282 = dma.done %s275, 1024
        $region48: #{forward.3} parent=39 // pred_fallthru
          _
        %p283 = scmp.lt.s32.totalorder %s27, 0
        %s284 = scalar_select %p283, %s27, 0
        %s285 = smul.addr %s284, 4
        %s286 = scalar_lea.vmem %s0, %s285
        %p287 = pneg %p55
        %p288 = pneg %p52
        %p289 = pneg %p76
        %p290 = pneg %p73
        %s291 = sand.u32 %s89, 1
        %s292 = scalar_lea.sflag [#allocation5], %s291
        %s293 = sand.u32 %s89, 1
        %s294 = smul.addr %s293, 64
        %s295 = scalar_lea.vmem [#allocation4], %s294
        %p296 = pneg %p102
        %p297 = pneg %p99
        %s298 = sand.u32 %s115, 1
        %s299 = scalar_lea.sflag [#allocation7], %s298
        %s300 = sand.u32 %s115, 1
        %s301 = smul.addr %s300, 64
        %s302 = scalar_lea.vmem [#allocation6], %s301
        %p303 = pneg %p128
        %p304 = pneg %p125
        %p305 = scmp.lt.s32.totalorder %s26, 1
        %s306 = scalar_select %p305, %s26, 1
        %s307 = smul.addr %s306, 4
        %s308 = scalar_lea.vmem %s4, %s307
        %p309 = pneg %p154
        %p310 = pneg %p151
        %p311 = pneg %p180
        %p312 = pneg %p177
        %s313 = sand.u32 %s167, 1
        %s314 = sand.u32 %s167, 1
        %s315 = smul.addr %s314, 16
        %s316 = scalar_lea.vmem [#allocation8], %s315
        %p317 = scmp.lt.s32.totalorder %s27, 0
        %s318 = scalar_select %p317, %s27, 0
        %s319 = smul.addr %s318, 4
        %s320 = scalar_lea.vmem %s0, %s319
        %p321 = scmp.lt.s32.totalorder %s26, 1
        %s322 = scalar_select %p321, %s26, 1
        %s323 = smul.addr %s322, 4
        %s324 = scalar_lea.vmem %s4, %s323
        %p326 = scmp.eq.s32.totalorder %s26, 0
        %p327 = scmp.eq.s32.totalorder %s27, 0
        %p328 = pnand %p326, %p327
        %p329 = pneg %p328
        // Predicated region
        $region49: #{forward.3} parent=39 // pred_check
          _
        $region50: #{forward.3} parent=39 // pred_check_branch
          %331 = sbr.rel (%p328) target = $region52
        $region51: #{forward.3} parent=39 // pred_region
          %v332 = vld [vmem:[%s1] sm:$0xff]
          %v333 = vld [vmem:[%s1 + $0x8] sm:$0xff]
          %334 = vst [vmem:[#allocation2] sm:$0xff] %v332
          %335 = vst [vmem:[#allocation2 + $0x8] sm:$0xff] %v333
        $region52: #{forward.3} parent=39 // pred_fallthru
          _
        // Predicated region
        $region53: #{forward.3} parent=39 // pred_check
          %p336 = pneg %p327
        $region54: #{forward.3} parent=39 // pred_check_branch
          %338 = sbr.rel (%p336) target = $region56
        $region55: #{forward.3} parent=39 // pred_region
          %v339 = vld [vmem:[#allocation2] sm:$0xff]
          %v340 = vld [vmem:[#allocation2 + $0x8] sm:$0xff]
          %341 = vst [vmem:[#allocation3] sm:$0xff] %v339
          %342 = vst [vmem:[#allocation3 + $0x8] sm:$0xff] %v340
        $region56: #{forward.3} parent=39 // pred_fallthru
          _
        %s343 = smul.u32 %s27, 16
        %s344 = scalar_lea.vmem [#allocation2], %s343
        %v345 = vld [vmem:[%s344] sm:$0xff]
        %v346 = vld [vmem:[%s344 + $0x8] sm:$0xff]
        %v347 = vpack.c.bf16 %v346, %v345
        %v348 = vld [vmem:[#allocation3] sm:$0xff]
        %v349 = vld [vmem:[#allocation3 + $0x8] sm:$0xff]
        %v350 = vld [vmem:[%s320] sm:$0xf]
        %v351 = vld [vmem:[%s320 + $0x4] sm:$0xf]
        %v354 = vunpack.c.l.b16 %v350
        %v355 = vunpack.c.l.b16 %v351
        %v356 = vpack.c.b16 %v355, %v354
        %vm357 = vcmask 130048
        %v359 = vsel %vm357, %v356, 0
        %361 = vmatprep.subr.bf16.mxu0 0
        %362 = vmatpush1.bf16.msra.mxu0 %v347
        %363 = vmatprep.subr.bf16.mxu0 0
        %364 = vmatpush1.bf16.msra.mxu0 0
        %365 = vmatprep.subr.bf16.mxu0 0
        %366 = vmatpush1.bf16.msra.mxu0 0
        %367 = vmatprep.subr.bf16.mxu0 0
        %368 = vmatpush1.bf16.msra.mxu0 0
        %369 = vmatprep.subr.bf16.mxu0 0
        %370 = vmatpush1.bf16.msra.mxu0 0
        %371 = vmatprep.subr.bf16.mxu0 0
        %372 = vmatpush1.bf16.msra.mxu0 0
        %373 = vmatprep.subr.bf16.mxu0 0
        %374 = vmatpush1.bf16.msra.mxu0 0
        %375 = vmatprep.subr.bf16.mxu0 0
        %376 = vmatpush1.bf16.msra.mxu0 0
        %377 = vmatprep.subr.bf16.mxu0 0
        %378 = vmatpush1.bf16.msra.mxu0 0
        %379 = vmatprep.subr.bf16.mxu0 0
        %380 = vmatpush1.bf16.msra.mxu0 0
        %381 = vmatprep.subr.bf16.mxu0 0
        %382 = vmatpush1.bf16.msra.mxu0 0
        %383 = vmatprep.subr.bf16.mxu0 0
        %384 = vmatpush1.bf16.msra.mxu0 0
        %385 = vmatprep.subr.bf16.mxu0 0
        %386 = vmatpush1.bf16.msra.mxu0 0
        %387 = vmatprep.subr.bf16.mxu0 0
        %388 = vmatpush1.bf16.msra.mxu0 0
        %389 = vmatprep.subr.bf16.mxu0 0
        %390 = vmatpush1.bf16.msra.mxu0 0
        %391 = vmatprep.subr.bf16.mxu0 0
        %392 = vmatpush1.bf16.msra.mxu0 0
        %393 = vmatprep.mubr.bf16.mxu0 0
        %394 = vmatmul.mubr.bf16.gmra.mrb[0].mxu0 %v359
        %v395 = vpop.f32.mrb[0].mxu0
        %v396 = vadd.f32 0.0, %v395
        %v397 = vpop.f32.mrb[0].mxu0
        %v398 = vpop.f32.mrb[0].mxu0
        %v399 = vadd.f32 0.0, %v398
        %v400 = vpop.f32.mrb[0].mxu0
        %401 = vdwg.mxu0
        %v402 = vadd.f32 %v348, %v396
        %v403 = vadd.f32 %v349, %v399
        %404 = vst [vmem:[#allocation3] sm:$0xff] %v402
        %405 = vst [vmem:[#allocation3 + $0x8] sm:$0xff] %v403
        // Predicated region
        $region57: #{forward.3} parent=39 // pred_check
          %p406 = pneg %p327
        $region58: #{forward.3} parent=39 // pred_check_branch
          %408 = sbr.rel (%p406) target = $region60
        $region59: #{forward.3} parent=39 // pred_region
          %v409 = vld [vmem:[#allocation3] sm:$0xff]
          %v410 = vld [vmem:[#allocation3 + $0x8] sm:$0xff]
          %v411 = vld [vmem:[%s324] sm:$0x1]
          %v412 = vld [vmem:[%s324 + $0x1] sm:$0x1]
          %v413 = vld [vmem:[%s324 + $0x2] sm:$0x1]
          %v414 = vld [vmem:[%s324 + $0x3] sm:$0x1]
          %v415 = vpack.c.bf16 %v410, %v409
          %v416 = vld [vmem:[%s269] sm:$0xf]
          %v417 = vld [vmem:[%s269 + $0x4] sm:$0xf]
          %v418 = vld [vmem:[%s269 + $0x8] sm:$0xf]
          %v419 = vld [vmem:[%s269 + $0xc] sm:$0xf]
          %v420 = vld [vmem:[%s269 + $0x10] sm:$0xf]
          %v421 = vld [vmem:[%s269 + $0x14] sm:$0xf]
          %v422 = vld [vmem:[%s269 + $0x18] sm:$0xf]
          %v423 = vld [vmem:[%s269 + $0x1c] sm:$0xf]
          %v424 = vld [vmem:[%s269 + $0x20] sm:$0xf]
          %v425 = vld [vmem:[%s269 + $0x24] sm:$0xf]
          %v426 = vld [vmem:[%s269 + $0x28] sm:$0xf]
          %v427 = vld [vmem:[%s269 + $0x2c] sm:$0xf]
          %v428 = vld [vmem:[%s269 + $0x30] sm:$0xf]
          %v429 = vld [vmem:[%s269 + $0x34] sm:$0xf]
          %v430 = vld [vmem:[%s269 + $0x38] sm:$0xf]
          %v431 = vld [vmem:[%s269 + $0x3c] sm:$0xf]
          %v432 = vlaneseq
          %v433 = vshrl.u32 %v432, 7
          %v434 = vsub.s32 0, %v433
          %v435 = vrot.slane %v411, %v434
          %v452 = vunpack.c.l.b16 %v416
          %v453 = vunpack.c.l.b16 %v417
          %v454 = vunpack.c.l.b16 %v418
          %v455 = vunpack.c.l.b16 %v419
          %v456 = vunpack.c.l.b16 %v420
          %v457 = vunpack.c.l.b16 %v421
          %v458 = vunpack.c.l.b16 %v422
          %v459 = vunpack.c.l.b16 %v423
          %v460 = vunpack.c.l.b16 %v424
          %v461 = vunpack.c.l.b16 %v425
          %v462 = vunpack.c.l.b16 %v426
          %v463 = vunpack.c.l.b16 %v427
          %v464 = vunpack.c.l.b16 %v428
          %v465 = vunpack.c.l.b16 %v429
          %v466 = vunpack.c.l.b16 %v430
          %v467 = vunpack.c.l.b16 %v431
          %v468 = vpack.c.b16 %v453, %v452
          %v469 = vpack.c.b16 %v455, %v454
          %v470 = vpack.c.b16 %v457, %v456
          %v471 = vpack.c.b16 %v459, %v458
          %v472 = vpack.c.b16 %v461, %v460
          %v473 = vpack.c.b16 %v463, %v462
          %v474 = vpack.c.b16 %v465, %v464
          %v475 = vpack.c.b16 %v467, %v466
          %484 = vmatprep.subr.bf16.mxu0 0
          %485 = vmatpush1.bf16.msra.mxu0 %v468
          %486 = vmatprep.subr.bf16.mxu0 0
          %487 = vmatpush1.bf16.msra.mxu0 %v469
          %488 = vmatprep.subr.bf16.mxu0 0
          %489 = vmatpush1.bf16.msra.mxu0 %v470
          %490 = vmatprep.subr.bf16.mxu0 0
          %491 = vmatpush1.bf16.msra.mxu0 %v471
          %492 = vmatprep.subr.bf16.mxu0 0
          %493 = vmatpush1.bf16.msra.mxu0 %v472
          %494 = vmatprep.subr.bf16.mxu0 0
          %495 = vmatpush1.bf16.msra.mxu0 %v473
          %496 = vmatprep.subr.bf16.mxu0 0
          %497 = vmatpush1.bf16.msra.mxu0 %v474
          %498 = vmatprep.subr.bf16.mxu0 0
          %499 = vmatpush1.bf16.msra.mxu0 %v475
          %500 = vmatprep.subr.bf16.mxu0 0
          %501 = vmatpush1.bf16.msra.mxu0 0
          %502 = vmatprep.subr.bf16.mxu0 0
          %503 = vmatpush1.bf16.msra.mxu0 0
          %504 = vmatprep.subr.bf16.mxu0 0
          %505 = vmatpush1.bf16.msra.mxu0 0
          %506 = vmatprep.subr.bf16.mxu0 0
          %507 = vmatpush1.bf16.msra.mxu0 0
          %508 = vmatprep.subr.bf16.mxu0 0
          %509 = vmatpush1.bf16.msra.mxu0 0
          %510 = vmatprep.subr.bf16.mxu0 0
          %511 = vmatpush1.bf16.msra.mxu0 0
          %512 = vmatprep.subr.bf16.mxu0 0
          %513 = vmatpush1.bf16.msra.mxu0 0
          %514 = vmatprep.subr.bf16.mxu0 0
          %515 = vmatpush1.bf16.msra.mxu0 0
          %516 = vmatprep.mubr.bf16.mxu0 0
          %517 = vmatmul.mubr.bf16.gmra.mrb[0].mxu0 %v415
          %v518 = vpop.f32.mrb[0].mxu0
          %v519 = vadd.f32 %v435, %v518
          %v520 = vpop.f32.mrb[0].mxu0
          %v521 = vpop.f32.mrb[0].mxu0
          %v522 = vadd.f32 %v435, %v521
          %v523 = vpop.f32.mrb[0].mxu0
          %524 = vdwg.mxu0
          %v525 = vmax.f32 %v519, 0.0
          %v526 = vmax.f32 %v522, 0.0
          %v527 = vpack.c.bf16 %v526, %v525
          %v528 = vld [vmem:[%s278] sm:$0xf]
          %v529 = vld [vmem:[%s278 + $0x4] sm:$0xf]
          %v530 = vld [vmem:[%s278 + $0x8] sm:$0xf]
          %v531 = vld [vmem:[%s278 + $0xc] sm:$0xf]
          %v532 = vld [vmem:[%s278 + $0x10] sm:$0xf]
          %v533 = vld [vmem:[%s278 + $0x14] sm:$0xf]
          %v534 = vld [vmem:[%s278 + $0x18] sm:$0xf]
          %v535 = vld [vmem:[%s278 + $0x1c] sm:$0xf]
          %v536 = vld [vmem:[%s278 + $0x20] sm:$0xf]
          %v537 = vld [vmem:[%s278 + $0x24] sm:$0xf]
          %v538 = vld [vmem:[%s278 + $0x28] sm:$0xf]
          %v539 = vld [vmem:[%s278 + $0x2c] sm:$0xf]
          %v540 = vld [vmem:[%s278 + $0x30] sm:$0xf]
          %v541 = vld [vmem:[%s278 + $0x34] sm:$0xf]
          %v542 = vld [vmem:[%s278 + $0x38] sm:$0xf]
          %v543 = vld [vmem:[%s278 + $0x3c] sm:$0xf]
          %v544 = vlaneseq
          %v545 = vshrl.u32 %v544, 7
          %v546 = vsub.s32 0, %v545
          %v547 = vrot.slane %v412, %v546
          %v564 = vunpack.c.l.b16 %v528
          %v565 = vunpack.c.l.b16 %v529
          %v566 = vunpack.c.l.b16 %v530
          %v567 = vunpack.c.l.b16 %v531
          %v568 = vunpack.c.l.b16 %v532
          %v569 = vunpack.c.l.b16 %v533
          %v570 = vunpack.c.l.b16 %v534
          %v571 = vunpack.c.l.b16 %v535
          %v572 = vunpack.c.l.b16 %v536
          %v573 = vunpack.c.l.b16 %v537
          %v574 = vunpack.c.l.b16 %v538
          %v575 = vunpack.c.l.b16 %v539
          %v576 = vunpack.c.l.b16 %v540
          %v577 = vunpack.c.l.b16 %v541
          %v578 = vunpack.c.l.b16 %v542
          %v579 = vunpack.c.l.b16 %v543
          %v580 = vpack.c.b16 %v565, %v564
          %v581 = vpack.c.b16 %v567, %v566
          %v582 = vpack.c.b16 %v569, %v568
          %v583 = vpack.c.b16 %v571, %v570
          %v584 = vpack.c.b16 %v573, %v572
          %v585 = vpack.c.b16 %v575, %v574
          %v586 = vpack.c.b16 %v577, %v576
          %v587 = vpack.c.b16 %v579, %v578
          %596 = vmatprep.subr.bf16.mxu0 0
          %597 = vmatpush1.bf16.msra.mxu0 %v580
          %598 = vmatprep.subr.bf16.mxu0 0
          %599 = vmatpush1.bf16.msra.mxu0 %v581
          %600 = vmatprep.subr.bf16.mxu0 0
          %601 = vmatpush1.bf16.msra.mxu0 %v582
          %602 = vmatprep.subr.bf16.mxu0 0
          %603 = vmatpush1.bf16.msra.mxu0 %v583
          %604 = vmatprep.subr.bf16.mxu0 0
          %605 = vmatpush1.bf16.msra.mxu0 %v584
          %606 = vmatprep.subr.bf16.mxu0 0
          %607 = vmatpush1.bf16.msra.mxu0 %v585
          %608 = vmatprep.subr.bf16.mxu0 0
          %609 = vmatpush1.bf16.msra.mxu0 %v586
          %610 = vmatprep.subr.bf16.mxu0 0
          %611 = vmatpush1.bf16.msra.mxu0 %v587
          %612 = vmatprep.subr.bf16.mxu0 0
          %613 = vmatpush1.bf16.msra.mxu0 0
          %614 = vmatprep.subr.bf16.mxu0 0
          %615 = vmatpush1.bf16.msra.mxu0 0
          %616 = vmatprep.subr.bf16.mxu0 0
          %617 = vmatpush1.bf16.msra.mxu0 0
          %618 = vmatprep.subr.bf16.mxu0 0
          %619 = vmatpush1.bf16.msra.mxu0 0
          %620 = vmatprep.subr.bf16.mxu0 0
          %621 = vmatpush1.bf16.msra.mxu0 0
          %622 = vmatprep.subr.bf16.mxu0 0
          %623 = vmatpush1.bf16.msra.mxu0 0
          %624 = vmatprep.subr.bf16.mxu0 0
          %625 = vmatpush1.bf16.msra.mxu0 0
          %626 = vmatprep.subr.bf16.mxu0 0
          %627 = vmatpush1.bf16.msra.mxu0 0
          %628 = vmatprep.mubr.bf16.mxu0 0
          %629 = vmatmul.mubr.bf16.gmra.mrb[0].mxu0 %v527
          %v630 = vpop.f32.mrb[0].mxu0
          %v631 = vadd.f32 %v547, %v630
          %v632 = vpop.f32.mrb[0].mxu0
          %v633 = vpop.f32.mrb[0].mxu0
          %v634 = vadd.f32 %v547, %v633
          %v635 = vpop.f32.mrb[0].mxu0
          %636 = vdwg.mxu0
          %v637 = vmax.f32 %v631, 0.0
          %v638 = vmax.f32 %v634, 0.0
          %v639 = vadd.f32 %v637, %v638
          %v640 = vrot.slane %v639, 4
          %v641 = vadd.f32 %v639, %v640
          %v642 = vrot.slane %v641, 2
          %v643 = vadd.f32 %v641, %v642
          %v644 = vrot.slane %v643, 1
          %v645 = vadd.f32 %v643, %v644
          %v646 = vmul.f32 %v645, 0.0625
          %v647 = vmul.f32 %v637, %v637
          %v648 = vmul.f32 %v638, %v638
          %v649 = vadd.f32 %v647, %v648
          %v650 = vrot.slane %v649, 4
          %v651 = vadd.f32 %v649, %v650
          %v652 = vrot.slane %v651, 2
          %v653 = vadd.f32 %v651, %v652
          %v654 = vrot.slane %v653, 1
          %v655 = vadd.f32 %v653, %v654
          %v656 = vmul.f32 %v655, 0.0625
          %v657 = vmul.f32 %v646, %v646
          %v658 = vsub.f32 %v656, %v657
          %v659 = vmax.f32 %v658, 0.0
          %v660 = vsub.f32 %v637, %v646
          %v661 = vsub.f32 %v638, %v646
          %v662 = vadd.f32 %v659, 1e-05
          %v663 = vrsqrt.pop %v662
          %v664 = vmul.f32 %v660, %v663
          %v665 = vmul.f32 %v661, %v663
          %v666 = vlaneseq
          %v667 = vshrl.u32 %v666, 7
          %v668 = vsub.s32 0, %v667
          %v669 = vrot.slane %v413, %v668
          %v670 = vmul.f32 %v664, %v669
          %v671 = vmul.f32 %v665, %v669
          %v672 = vlaneseq
          %v673 = vshrl.u32 %v672, 7
          %v674 = vsub.s32 0, %v673
          %v675 = vrot.slane %v414, %v674
          %v676 = vadd.f32 %v670, %v675
          %v677 = vadd.f32 %v671, %v675
          %678 = vst [vmem:[%s316] sm:$0xff] %v676
          %679 = vst [vmem:[%s316 + $0x8] sm:$0xff] %v677
          %680 = vst [vmem:[#allocation2] sm:$0xff] %v676
          %681 = vst [vmem:[#allocation2 + $0x8] sm:$0xff] %v677
        $region60: #{forward.3} parent=39 // pred_fallthru
          _
        %s682 = sand.u32 %s167, 1
        %s683 = sand.u32 %s167, 1
        %s684 = smul.addr %s683, 16
        %s685 = scalar_lea.vmem [#allocation8], %s684
        // Predicated region
        $region61: #{forward.3} parent=39 // pred_check
          %p686 = pneg %p177
        $region62: #{forward.3} parent=39 // pred_check_branch
          %688 = sbr.rel (%p686) target = $region64
        $region63: #{forward.3} parent=39 // pred_region
          %s689 = smul.addr %s26, 8
          %s690 = scalar_lea.vmem %s5, %s689
          // Predicated region
          $region65: #{forward.3} parent=63 // pred_check
            _
          $region66: #{forward.3} parent=63 // pred_check_branch
            %692 = sbr.rel (0) target = $region68
          $region67: #{forward.3} parent=63 // pred_region
            // Predicated region
            $region69: #{forward.3} parent=67 // pred_check
              _
            $region70: #{forward.3} parent=67 // pred_check_branch
              %694 = sbr.rel (0) target = $region72
            $region71: #{forward.3} parent=67 // pred_region
              // Predicated region
              $region84: #{forward.3} parent=71 // pred_check
                _
              $region85: #{forward.3} parent=71 // pred_check_branch
                %711 = sbr.rel (0) target = $region87
              $region86: #{forward.3} parent=71 // pred_region
                loop: start=0, step=1, limit=1
                $region88: #{forward.3} parent=86 // loop_pre_header
                  _
                $region89: #{forward.3} parent=86 // loop_header
                  %s713 = sphi 0, %s717
                  %p714 = scmp.ge.s32.totalorder %s713, 1
                  %s718 = sphi %s685, %s685
                  %s719 = sphi %s690, %s690
                $region90: #{forward.3} parent=86 // loop_header_branch
                  %716 = sbr.rel (%p714) target = $region94
                $region91: #{forward.3} parent=86 // loop_body
                  %v720 = vld [vmem:[%s718] sm:$0xff]
                  %721 = vst [vmem:[%s719] sm:$0xff] %v720
                  %v722 = vld [vmem:[%s718 + $0x8] sm:$0xff]
                  %723 = vst [vmem:[%s719 + $0x10] sm:$0xff] %v722
                $region92: #{forward.3} parent=86 // loop_footer
                  %s717 = sadd.s32 1, %s713
                $region93: #{forward.3} parent=86 // loop_footer_branch
                  %712 = sbr.rel target = $region89
                $region94: #{forward.3} parent=86 // loop_exit
                  _
              $region87: #{forward.3} parent=71 // pred_fallthru
                _
              // Predicated region
              $region95: #{forward.3} parent=71 // pred_check
                _
              $region96: #{forward.3} parent=71 // pred_check_branch
                %725 = sbr.rel target = $region98
              $region97: #{forward.3} parent=71 // pred_region
                _
              $region98: #{forward.3} parent=71 // pred_fallthru
                _
            $region72: #{forward.3} parent=67 // pred_fallthru
              _
            // Predicated region
            $region73: #{forward.3} parent=67 // pred_check
              _
            $region74: #{forward.3} parent=67 // pred_check_branch
              %696 = sbr.rel target = $region76
            $region75: #{forward.3} parent=67 // pred_region
              loop: start=0, step=1, limit=1
              $region77: #{forward.3} parent=75 // loop_pre_header
                _
              $region78: #{forward.3} parent=75 // loop_header
                %s699 = sphi 0, %s703
                %p700 = scmp.ge.s32.totalorder %s699, 1
                %s704 = sphi %s685, %s685
                %s705 = sphi %s690, %s690
              $region79: #{forward.3} parent=75 // loop_header_branch
                %702 = sbr.rel (%p700) target = $region83
              $region80: #{forward.3} parent=75 // loop_body
                %v706 = vld [vmem:[%s704] sm:$0xff]
                %707 = vst [vmem:[%s705] sm:$0xff] %v706
                %v708 = vld [vmem:[%s704 + $0x8] sm:$0xff]
                %709 = vst [vmem:[%s705 + $0x10] sm:$0xff] %v708
              $region81: #{forward.3} parent=75 // loop_footer
                %s703 = sadd.s32 1, %s699
              $region82: #{forward.3} parent=75 // loop_footer_branch
                %698 = sbr.rel target = $region78
              $region83: #{forward.3} parent=75 // loop_exit
                _
            $region76: #{forward.3} parent=67 // pred_fallthru
              _
          $region68: #{forward.3} parent=63 // pred_fallthru
            _
          %726 = vnop
        $region64: #{forward.3} parent=39 // pred_fallthru
          _
      $region40: #{forward.3} parent=5 // pred_fallthru
        _
      %p727 = scmp.le.s32.totalorder 2, %s17
      // Predicated region
      $region99: #{forward.3} parent=5 // pred_check
        %p728 = pneg %p727
      $region100: #{forward.3} parent=5 // pred_check_branch
        %730 = sbr.rel (%p728) target = $region102
      $region101: #{forward.3} parent=5 // pred_region
        %s731 = ssub.s32 %s17, 2
        // Predicated region
        $region103: #{forward.3} parent=101 // pred_check
          %p732 = pneg %p183
        $region104: #{forward.3} parent=101 // pred_check_branch
          %734 = sbr.rel (%p732) target = $region106
        $region105: #{forward.3} parent=101 // pred_region
          %s735 = sand.u32 %s168, 1
          %s736 = sand.u32 %s168, 1
          %s737 = smul.addr %s736, 16
          %s738 = scalar_lea.vmem [#allocation8], %s737
        $region106: #{forward.3} parent=101 // pred_fallthru
          _
      $region102: #{forward.3} parent=5 // pred_fallthru
        _
    $region6: #{forward.3} parent=1 // loop_footer
      %s21 = sadd.s32 1, %s17
    $region7: #{forward.3} parent=1 // loop_footer_branch
      %16 = sbr.rel target = $region3
    $region8: #{forward.3} parent=1 // loop_exit
      _
    %739 = vsyncpa [#allocation5], 1
    %s740 = scalar_lea.sflag [#allocation5], 1
    %741 = vsyncpa %s740, 1
    %742 = vsyncpa [#allocation7], 1
    %s743 = scalar_lea.sflag [#allocation7], 1
    %744 = vsyncpa %s743, 1

// kernel: forward.4
$region0: #{forward.4}
  #allocation0 [shape = 'u32[]', space=smem, size = 0x4, offset = 0x4, fixed_abs, tag = 'smem constant byte address 0x4 - core index']
  #allocation1 [shape = 'u32[144,128]{1,0:T(1,128)}', space=vmem, size = 0x12000, scoped, tag = 'internal scratch']
  %s0 = inlined_call_operand.vmem [shape: f32[8,128], index: 0, kind: input, shape index: {}]
  %s1 = inlined_call_operand.vmem [shape: bf16[128,256], index: 1, kind: input, shape index: {}]
  %s2 = inlined_call_operand.vmem [shape: f32[1,256], index: 2, kind: input, shape index: {}]
  %s3 = inlined_call_operand.vmem [shape: bf16[128,128], index: 3, kind: input, shape index: {}]
  %s4 = inlined_call_operand.vmem [shape: f32[1,128], index: 4, kind: input, shape index: {}]
  %s5 = inlined_call_operand.vmem [shape: bf16[128,128], index: 5, kind: input, shape index: {}]
  %s6 = inlined_call_operand.vmem [shape: f32[1,128], index: 6, kind: input, shape index: {}]
  %s7 = inlined_call_operand.vmem [shape: f32[8,128], index: 7, kind: output, shape index: {}]
  %s8 = sld [smem:[#allocation0]]
  $region38: #{forward.4} parent=0
    _
  %s10 = ssub.s32 1, %s8
  %s11 = scalar_select 0, %s10, %s8
  // Predicated region
  $region2: #{forward.4} parent=0 // pred_check
    _
  $region3: #{forward.4} parent=0 // pred_check_branch
    %13 = sbr.rel (0) target = $region5
  $region4: #{forward.4} parent=0 // pred_region
    _
  $region5: #{forward.4} parent=0 // pred_fallthru
    _
  // Predicated region
  $region6: #{forward.4} parent=0 // pred_check
    _
  $region7: #{forward.4} parent=0 // pred_check_branch
    %15 = sbr.rel (0) target = $region9
  $region8: #{forward.4} parent=0 // pred_region
    _
  $region9: #{forward.4} parent=0 // pred_fallthru
    _
  // Predicated region
  $region10: #{forward.4} parent=0 // pred_check
    _
  $region11: #{forward.4} parent=0 // pred_check_branch
    %17 = sbr.rel (0) target = $region13
  $region12: #{forward.4} parent=0 // pred_region
    _
  $region13: #{forward.4} parent=0 // pred_fallthru
    _
  // Predicated region
  $region14: #{forward.4} parent=0 // pred_check
    _
  $region15: #{forward.4} parent=0 // pred_check_branch
    %19 = sbr.rel (0) target = $region17
  $region16: #{forward.4} parent=0 // pred_region
    _
  $region17: #{forward.4} parent=0 // pred_fallthru
    _
  // Predicated region
  $region18: #{forward.4} parent=0 // pred_check
    _
  $region19: #{forward.4} parent=0 // pred_check_branch
    %21 = sbr.rel (0) target = $region21
  $region20: #{forward.4} parent=0 // pred_region
    _
  $region21: #{forward.4} parent=0 // pred_fallthru
    _
  // Predicated region
  $region22: #{forward.4} parent=0 // pred_check
    _
  $region23: #{forward.4} parent=0 // pred_check_branch
    %23 = sbr.rel (0) target = $region25
  $region24: #{forward.4} parent=0 // pred_region
    _
  $region25: #{forward.4} parent=0 // pred_fallthru
    _
  // Predicated region
  $region26: #{forward.4} parent=0 // pred_check
    _
  $region27: #{forward.4} parent=0 // pred_check_branch
    %25 = sbr.rel (0) target = $region29
  $region28: #{forward.4} parent=0 // pred_region
    _
  $region29: #{forward.4} parent=0 // pred_fallthru
    _
  %v27 = vld [vmem:[%s0] sm:$0xff]
  %v28 = vpack.c.bf16 %v27, %v27
  %v29 = vld [vmem:[%s1] sm:$0xff]
  %v30 = vld [vmem:[%s1 + $0x8] sm:$0xff]
  %v31 = vld [vmem:[%s1 + $0x10] sm:$0xff]
  %v32 = vld [vmem:[%s1 + $0x18] sm:$0xff]
  %v33 = vld [vmem:[%s1 + $0x20] sm:$0xff]
  %v34 = vld [vmem:[%s1 + $0x28] sm:$0xff]
  %v35 = vld [vmem:[%s1 + $0x30] sm:$0xff]
  %v36 = vld [vmem:[%s1 + $0x38] sm:$0xff]
  %v37 = vld [vmem:[%s1 + $0x40] sm:$0xff]
  %v38 = vld [vmem:[%s1 + $0x48] sm:$0xff]
  %v39 = vld [vmem:[%s1 + $0x50] sm:$0xff]
  %v40 = vld [vmem:[%s1 + $0x58] sm:$0xff]
  %v41 = vld [vmem:[%s1 + $0x60] sm:$0xff]
  %v42 = vld [vmem:[%s1 + $0x68] sm:$0xff]
  %v43 = vld [vmem:[%s1 + $0x70] sm:$0xff]
  %v44 = vld [vmem:[%s1 + $0x78] sm:$0xff]
  %v45 = vld [vmem:[%s2] sm:$0x3]
  %v47 = vlaneseq
  %v48 = vshrl.u32 %v47, 7
  %v49 = vsub.s32 0, %v48
  %v50 = vrot.slane %v45, %v49
  %v51 = vlaneseq
  %v52 = vshrl.u32 %v51, 7
  %v53 = vsub.s32 1, %v52
  %v54 = vrot.slane %v45, %v53
  %v73 = vunpack.c.l.b16 %v29
  %v74 = vunpack.c.h.b16 %v29
  %v75 = vunpack.c.l.b16 %v30
  %v76 = vunpack.c.h.b16 %v30
  %v77 = vunpack.c.l.b16 %v31
  %v78 = vunpack.c.h.b16 %v31
  %v79 = vunpack.c.l.b16 %v32
  %v80 = vunpack.c.h.b16 %v32
  %v81 = vunpack.c.l.b16 %v33
  %v82 = vunpack.c.h.b16 %v33
  %v83 = vunpack.c.l.b16 %v34
  %v84 = vunpack.c.h.b16 %v34
  %v85 = vunpack.c.l.b16 %v35
  %v86 = vunpack.c.h.b16 %v35
  %v87 = vunpack.c.l.b16 %v36
  %v88 = vunpack.c.h.b16 %v36
  %v89 = vunpack.c.l.b16 %v37
  %v90 = vunpack.c.h.b16 %v37
  %v91 = vunpack.c.l.b16 %v38
  %v92 = vunpack.c.h.b16 %v38
  %v93 = vunpack.c.l.b16 %v39
  %v94 = vunpack.c.h.b16 %v39
  %v95 = vunpack.c.l.b16 %v40
  %v96 = vunpack.c.h.b16 %v40
  %v97 = vunpack.c.l.b16 %v41
  %v98 = vunpack.c.h.b16 %v41
  %v99 = vunpack.c.l.b16 %v42
  %v100 = vunpack.c.h.b16 %v42
  %v101 = vunpack.c.l.b16 %v43
  %v102 = vunpack.c.h.b16 %v43
  %v103 = vunpack.c.l.b16 %v44
  %v104 = vunpack.c.h.b16 %v44
  %v105 = vpack.c.b16 %v75, %v73
  %v106 = vpack.c.b16 %v76, %v74
  %v107 = vpack.c.b16 %v79, %v77
  %v108 = vpack.c.b16 %v80, %v78
  %v109 = vpack.c.b16 %v83, %v81
  %v110 = vpack.c.b16 %v84, %v82
  %v111 = vpack.c.b16 %v87, %v85
  %v112 = vpack.c.b16 %v88, %v86
  %v113 = vpack.c.b16 %v91, %v89
  %v114 = vpack.c.b16 %v92, %v90
  %v115 = vpack.c.b16 %v95, %v93
  %v116 = vpack.c.b16 %v96, %v94
  %v117 = vpack.c.b16 %v99, %v97
  %v118 = vpack.c.b16 %v100, %v98
  %v119 = vpack.c.b16 %v103, %v101
  %v120 = vpack.c.b16 %v104, %v102
  %137 = vmatprep.subr.bf16.mxu0 %v106
  %138 = vmatpush1.bf16.msra.mxu0 %v105
  %139 = vmatprep.subr.bf16.mxu0 %v108
  %140 = vmatpush1.bf16.msra.mxu0 %v107
  %141 = vmatprep.subr.bf16.mxu0 %v110
  %142 = vmatpush1.bf16.msra.mxu0 %v109
  %143 = vmatprep.subr.bf16.mxu0 %v112
  %144 = vmatpush1.bf16.msra.mxu0 %v111
  %145 = vmatprep.subr.bf16.mxu0 %v114
  %146 = vmatpush1.bf16.msra.mxu0 %v113
  %147 = vmatprep.subr.bf16.mxu0 %v116
  %148 = vmatpush1.bf16.msra.mxu0 %v115
  %149 = vmatprep.subr.bf16.mxu0 %v118
  %150 = vmatpush1.bf16.msra.mxu0 %v117
  %151 = vmatprep.subr.bf16.mxu0 %v120
  %152 = vmatpush1.bf16.msra.mxu0 %v119
  %153 = vmatprep.subr.bf16.mxu0 0
  %154 = vmatpush1.bf16.msra.mxu0 0
  %155 = vmatprep.subr.bf16.mxu0 0
  %156 = vmatpush1.bf16.msra.mxu0 0
  %157 = vmatprep.subr.bf16.mxu0 0
  %158 = vmatpush1.bf16.msra.mxu0 0
  %159 = vmatprep.subr.bf16.mxu0 0
  %160 = vmatpush1.bf16.msra.mxu0 0
  %161 = vmatprep.subr.bf16.mxu0 0
  %162 = vmatpush1.bf16.msra.mxu0 0
  %163 = vmatprep.subr.bf16.mxu0 0
  %164 = vmatpush1.bf16.msra.mxu0 0
  %165 = vmatprep.subr.bf16.mxu0 0
  %166 = vmatpush1.bf16.msra.mxu0 0
  %167 = vmatprep.subr.bf16.mxu0 0
  %168 = vmatpush1.bf16.msra.mxu0 0
  %169 = vmatprep.mubr.bf16.mxu0 0
  %170 = vmatmul.mubr.bf16.gmra.mrb[0].mxu0 %v28
  %v171 = vpop.f32.mrb[0].mxu0
  %v172 = vadd.f32 %v50, %v171
  %v173 = vpop.f32.mrb[0].mxu0
  %v174 = vadd.f32 %v54, %v173
  %v175 = vpop.f32.mrb[0].mxu0
  %v176 = vpop.f32.mrb[0].mxu0
  %177 = vdwg.mxu0
  %v178 = vmax.f32 %v172, 0.0
  %v179 = vpack.c.bf16 %v178, %v178
  %v180 = vld [vmem:[%s3] sm:$0xf]
  %v181 = vld [vmem:[%s3 + $0x4] sm:$0xf]
  %v182 = vld [vmem:[%s3 + $0x8] sm:$0xf]
  %v183 = vld [vmem:[%s3 + $0xc] sm:$0xf]
  %v184 = vld [vmem:[%s3 + $0x10] sm:$0xf]
  %v185 = vld [vmem:[%s3 + $0x14] sm:$0xf]
  %v186 = vld [vmem:[%s3 + $0x18] sm:$0xf]
  %v187 = vld [vmem:[%s3 + $0x1c] sm:$0xf]
  %v188 = vld [vmem:[%s3 + $0x20] sm:$0xf]
  %v189 = vld [vmem:[%s3 + $0x24] sm:$0xf]
  %v190 = vld [vmem:[%s3 + $0x28] sm:$0xf]
  %v191 = vld [vmem:[%s3 + $0x2c] sm:$0xf]
  %v192 = vld [vmem:[%s3 + $0x30] sm:$0xf]
  %v193 = vld [vmem:[%s3 + $0x34] sm:$0xf]
  %v194 = vld [vmem:[%s3 + $0x38] sm:$0xf]
  %v195 = vld [vmem:[%s3 + $0x3c] sm:$0xf]
  %v196 = vld [vmem:[%s4] sm:$0x1]
  %v198 = vlaneseq
  %v199 = vshrl.u32 %v198, 7
  %v200 = vsub.s32 0, %v199
  %v201 = vrot.slane %v196, %v200
  %v219 = vunpack.c.l.b16 %v180
  %v220 = vunpack.c.l.b16 %v181
  %v221 = vunpack.c.l.b16 %v182
  %v222 = vunpack.c.l.b16 %v183
  %v223 = vunpack.c.l.b16 %v184
  %v224 = vunpack.c.l.b16 %v185
  %v225 = vunpack.c.l.b16 %v186
  %v226 = vunpack.c.l.b16 %v187
  %v227 = vunpack.c.l.b16 %v188
  %v228 = vunpack.c.l.b16 %v189
  %v229 = vunpack.c.l.b16 %v190
  %v230 = vunpack.c.l.b16 %v191
  %v231 = vunpack.c.l.b16 %v192
  %v232 = vunpack.c.l.b16 %v193
  %v233 = vunpack.c.l.b16 %v194
  %v234 = vunpack.c.l.b16 %v195
  %v235 = vpack.c.b16 %v220, %v219
  %v236 = vpack.c.b16 %v222, %v221
  %v237 = vpack.c.b16 %v224, %v223
  %v238 = vpack.c.b16 %v226, %v225
  %v239 = vpack.c.b16 %v228, %v227
  %v240 = vpack.c.b16 %v230, %v229
  %v241 = vpack.c.b16 %v232, %v231
  %v242 = vpack.c.b16 %v234, %v233
  %251 = vmatprep.subr.bf16.mxu0 0
  %252 = vmatpush1.bf16.msra.mxu0 %v235
  %253 = vmatprep.subr.bf16.mxu0 0
  %254 = vmatpush1.bf16.msra.mxu0 %v236
  %255 = vmatprep.subr.bf16.mxu0 0
  %256 = vmatpush1.bf16.msra.mxu0 %v237
  %257 = vmatprep.subr.bf16.mxu0 0
  %258 = vmatpush1.bf16.msra.mxu0 %v238
  %259 = vmatprep.subr.bf16.mxu0 0
  %260 = vmatpush1.bf16.msra.mxu0 %v239
  %261 = vmatprep.subr.bf16.mxu0 0
  %262 = vmatpush1.bf16.msra.mxu0 %v240
  %263 = vmatprep.subr.bf16.mxu0 0
  %264 = vmatpush1.bf16.msra.mxu0 %v241
  %265 = vmatprep.subr.bf16.mxu0 0
  %266 = vmatpush1.bf16.msra.mxu0 %v242
  %267 = vmatprep.subr.bf16.mxu0 0
  %268 = vmatpush1.bf16.msra.mxu0 0
  %269 = vmatprep.subr.bf16.mxu0 0
  %270 = vmatpush1.bf16.msra.mxu0 0
  %271 = vmatprep.subr.bf16.mxu0 0
  %272 = vmatpush1.bf16.msra.mxu0 0
  %273 = vmatprep.subr.bf16.mxu0 0
  %274 = vmatpush1.bf16.msra.mxu0 0
  %275 = vmatprep.subr.bf16.mxu0 0
  %276 = vmatpush1.bf16.msra.mxu0 0
  %277 = vmatprep.subr.bf16.mxu0 0
  %278 = vmatpush1.bf16.msra.mxu0 0
  %279 = vmatprep.subr.bf16.mxu0 0
  %280 = vmatpush1.bf16.msra.mxu0 0
  %281 = vmatprep.subr.bf16.mxu0 0
  %282 = vmatpush1.bf16.msra.mxu0 0
  %283 = vmatprep.mubr.bf16.mxu0 0
  %284 = vmatmul.mubr.bf16.gmra.mrb[0].mxu0 %v179
  %v285 = vpop.f32.mrb[0].mxu0
  %v286 = vadd.f32 %v201, %v285
  %v287 = vpop.f32.mrb[0].mxu0
  %v288 = vpop.f32.mrb[0].mxu0
  %v289 = vpop.f32.mrb[0].mxu0
  %290 = vdwg.mxu0
  %v291 = vmax.f32 %v286, 0.0
  %v292 = vpack.c.bf16 %v291, %v291
  %v293 = vld [vmem:[%s5] sm:$0xf]
  %v294 = vld [vmem:[%s5 + $0x4] sm:$0xf]
  %v295 = vld [vmem:[%s5 + $0x8] sm:$0xf]
  %v296 = vld [vmem:[%s5 + $0xc] sm:$0xf]
  %v297 = vld [vmem:[%s5 + $0x10] sm:$0xf]
  %v298 = vld [vmem:[%s5 + $0x14] sm:$0xf]
  %v299 = vld [vmem:[%s5 + $0x18] sm:$0xf]
  %v300 = vld [vmem:[%s5 + $0x1c] sm:$0xf]
  %v301 = vld [vmem:[%s5 + $0x20] sm:$0xf]
  %v302 = vld [vmem:[%s5 + $0x24] sm:$0xf]
  %v303 = vld [vmem:[%s5 + $0x28] sm:$0xf]
  %v304 = vld [vmem:[%s5 + $0x2c] sm:$0xf]
  %v305 = vld [vmem:[%s5 + $0x30] sm:$0xf]
  %v306 = vld [vmem:[%s5 + $0x34] sm:$0xf]
  %v307 = vld [vmem:[%s5 + $0x38] sm:$0xf]
  %v308 = vld [vmem:[%s5 + $0x3c] sm:$0xf]
  %v309 = vld [vmem:[%s6] sm:$0x1]
  %v311 = vlaneseq
  %v312 = vshrl.u32 %v311, 7
  %v313 = vsub.s32 0, %v312
  %v314 = vrot.slane %v309, %v313
  %v332 = vunpack.c.l.b16 %v293
  %v333 = vunpack.c.l.b16 %v294
  %v334 = vunpack.c.l.b16 %v295
  %v335 = vunpack.c.l.b16 %v296
  %v336 = vunpack.c.l.b16 %v297
  %v337 = vunpack.c.l.b16 %v298
  %v338 = vunpack.c.l.b16 %v299
  %v339 = vunpack.c.l.b16 %v300
  %v340 = vunpack.c.l.b16 %v301
  %v341 = vunpack.c.l.b16 %v302
  %v342 = vunpack.c.l.b16 %v303
  %v343 = vunpack.c.l.b16 %v304
  %v344 = vunpack.c.l.b16 %v305
  %v345 = vunpack.c.l.b16 %v306
  %v346 = vunpack.c.l.b16 %v307
  %v347 = vunpack.c.l.b16 %v308
  %v348 = vpack.c.b16 %v333, %v332
  %v349 = vpack.c.b16 %v335, %v334
  %v350 = vpack.c.b16 %v337, %v336
  %v351 = vpack.c.b16 %v339, %v338
  %v352 = vpack.c.b16 %v341, %v340
  %v353 = vpack.c.b16 %v343, %v342
  %v354 = vpack.c.b16 %v345, %v344
  %v355 = vpack.c.b16 %v347, %v346
  %364 = vmatprep.subr.bf16.mxu0 0
  %365 = vmatpush1.bf16.msra.mxu0 %v348
  %366 = vmatprep.subr.bf16.mxu0 0
  %367 = vmatpush1.bf16.msra.mxu0 %v349
  %368 = vmatprep.subr.bf16.mxu0 0
  %369 = vmatpush1.bf16.msra.mxu0 %v350
  %370 = vmatprep.subr.bf16.mxu0 0
  %371 = vmatpush1.bf16.msra.mxu0 %v351
  %372 = vmatprep.subr.bf16.mxu0 0
  %373 = vmatpush1.bf16.msra.mxu0 %v352
  %374 = vmatprep.subr.bf16.mxu0 0
  %375 = vmatpush1.bf16.msra.mxu0 %v353
  %376 = vmatprep.subr.bf16.mxu0 0
  %377 = vmatpush1.bf16.msra.mxu0 %v354
  %378 = vmatprep.subr.bf16.mxu0 0
  %379 = vmatpush1.bf16.msra.mxu0 %v355
  %380 = vmatprep.subr.bf16.mxu0 0
  %381 = vmatpush1.bf16.msra.mxu0 0
  %382 = vmatprep.subr.bf16.mxu0 0
  %383 = vmatpush1.bf16.msra.mxu0 0
  %384 = vmatprep.subr.bf16.mxu0 0
  %385 = vmatpush1.bf16.msra.mxu0 0
  %386 = vmatprep.subr.bf16.mxu0 0
  %387 = vmatpush1.bf16.msra.mxu0 0
  %388 = vmatprep.subr.bf16.mxu0 0
  %389 = vmatpush1.bf16.msra.mxu0 0
  %390 = vmatprep.subr.bf16.mxu0 0
  %391 = vmatpush1.bf16.msra.mxu0 0
  %392 = vmatprep.subr.bf16.mxu0 0
  %393 = vmatpush1.bf16.msra.mxu0 0
  %394 = vmatprep.subr.bf16.mxu0 0
  %395 = vmatpush1.bf16.msra.mxu0 0
  %396 = vmatprep.mubr.bf16.mxu0 0
  %397 = vmatmul.mubr.bf16.gmra.mrb[0].mxu0 %v292
  %v398 = vpop.f32.mrb[0].mxu0
  %v399 = vadd.f32 %v314, %v398
  %v400 = vpop.f32.mrb[0].mxu0
  %v401 = vpop.f32.mrb[0].mxu0
  %v402 = vpop.f32.mrb[0].mxu0
  %403 = vdwg.mxu0
  %v404 = vmax.f32 %v399, 0.0
  %v405 = vadd.f32 %v404, %v174
  %406 = vst [vmem:[%s7] sm:$0xff] %v405
  // Predicated region
  $region30: #{forward.4} parent=0 // pred_check
    _
  $region31: #{forward.4} parent=0 // pred_check_branch
    %408 = sbr.rel (0) target = $region33
  $region32: #{forward.4} parent=0 // pred_region
    _
  $region33: #{forward.4} parent=0 // pred_fallthru
    _
  // Predicated region
  $region34: #{forward.4} parent=0 // pred_check
    _
  $region35: #{forward.4} parent=0 // pred_check_branch
    %410 = sbr.rel (0) target = $region37
  $region36: #{forward.4} parent=0 // pred_region
    _
  $region37: #{forward.4} parent=0 // pred_fallthru
    _

// kernel: forward.5
$region0: #{forward.5}
  #allocation0 [shape = 'u32[]', space=smem, size = 0x4, offset = 0x4, fixed_abs, tag = 'smem constant byte address 0x4 - core index']
  #allocation1 [shape = 'u32[144,128]{1,0:T(1,128)}', space=vmem, size = 0x12000, scoped, tag = 'internal scratch']
  #allocation2 [shape = 'f32[1]{0:T(128)}', space=smem, size = 0x200, scoped, tag = 'scratch operand']
  %s0 = inlined_call_operand.vmem [shape: f32[16,256], index: 0, kind: input, shape index: {}]
  %s1 = inlined_call_operand.vmem [shape: s32[16,1], index: 1, kind: input, shape index: {}]
  %s2 = inlined_call_operand.vmem [shape: bf16[256,256], index: 2, kind: input, shape index: {}]
  %s3 = inlined_call_operand.vmem [shape: f32[1,256], index: 3, kind: input, shape index: {}]
  %s4 = inlined_call_operand.vmem [shape: bf16[128,128], index: 4, kind: input, shape index: {}]
  %s5 = inlined_call_operand.vmem [shape: f32[1,128], index: 5, kind: input, shape index: {}]
  %s6 = inlined_call_operand.vmem [shape: bf16[128,128], index: 6, kind: input, shape index: {}]
  %s7 = inlined_call_operand.vmem [shape: f32[1,128], index: 7, kind: input, shape index: {}]
  %s8 = inlined_call_operand.vmem [shape: bf16[128,128], index: 8, kind: input, shape index: {}]
  %s9 = inlined_call_operand.hbm [shape: f32[1], index: 9, kind: output, shape index: {}]
  %s10 = sld [smem:[#allocation0]]
  $region54: #{forward.5} parent=0
    _
  %s12 = ssub.s32 1, %s10
  %s13 = scalar_select 0, %s12, %s10
  $region1: #{forward.5} parent=0
    #allocation3 [shape = 'u8[512]{0}', space=smem, size = 0x200, scoped, tag = 'output window, operand 0, single buffered']
    #allocation4 [shape = 's32[1]{0}', space=sflag, size = 0x4, scoped, tag = 'scoped memory for forward.5']
    %14 = vsyncpa [#allocation4], 0
    // Predicated region
    $region2: #{forward.5} parent=1 // pred_check
      _
    $region3: #{forward.5} parent=1 // pred_check_branch
      %16 = sbr.rel (0) target = $region5
    $region4: #{forward.5} parent=1 // pred_region
      _
    $region5: #{forward.5} parent=1 // pred_fallthru
      _
    // Predicated region
    $region6: #{forward.5} parent=1 // pred_check
      _
    $region7: #{forward.5} parent=1 // pred_check_branch
      %18 = sbr.rel (0) target = $region9
    $region8: #{forward.5} parent=1 // pred_region
      _
    $region9: #{forward.5} parent=1 // pred_fallthru
      _
    // Predicated region
    $region10: #{forward.5} parent=1 // pred_check
      _
    $region11: #{forward.5} parent=1 // pred_check_branch
      %20 = sbr.rel (0) target = $region13
    $region12: #{forward.5} parent=1 // pred_region
      _
    $region13: #{forward.5} parent=1 // pred_fallthru
      _
    // Predicated region
    $region14: #{forward.5} parent=1 // pred_check
      _
    $region15: #{forward.5} parent=1 // pred_check_branch
      %22 = sbr.rel (0) target = $region17
    $region16: #{forward.5} parent=1 // pred_region
      _
    $region17: #{forward.5} parent=1 // pred_fallthru
      _
    // Predicated region
    $region18: #{forward.5} parent=1 // pred_check
      _
    $region19: #{forward.5} parent=1 // pred_check_branch
      %24 = sbr.rel (0) target = $region21
    $region20: #{forward.5} parent=1 // pred_region
      _
    $region21: #{forward.5} parent=1 // pred_fallthru
      _
    // Predicated region
    $region22: #{forward.5} parent=1 // pred_check
      _
    $region23: #{forward.5} parent=1 // pred_check_branch
      %26 = sbr.rel (0) target = $region25
    $region24: #{forward.5} parent=1 // pred_region
      _
    $region25: #{forward.5} parent=1 // pred_fallthru
      _
    // Predicated region
    $region26: #{forward.5} parent=1 // pred_check
      _
    $region27: #{forward.5} parent=1 // pred_check_branch
      %28 = sbr.rel (0) target = $region29
    $region28: #{forward.5} parent=1 // pred_region
      _
    $region29: #{forward.5} parent=1 // pred_fallthru
      _
    // Predicated region
    $region30: #{forward.5} parent=1 // pred_check
      _
    $region31: #{forward.5} parent=1 // pred_check_branch
      %30 = sbr.rel (0) target = $region33
    $region32: #{forward.5} parent=1 // pred_region
      _
    $region33: #{forward.5} parent=1 // pred_fallthru
      _
    // Predicated region
    $region34: #{forward.5} parent=1 // pred_check
      _
    $region35: #{forward.5} parent=1 // pred_check_branch
      %32 = sbr.rel (0) target = $region37
    $region36: #{forward.5} parent=1 // pred_region
      _
    $region37: #{forward.5} parent=1 // pred_fallthru
      _
    %p34 = scmp.eq.s32.totalorder 0, 0
    // Predicated region
    $region38: #{forward.5} parent=1 // pred_check
      %p35 = pneg %p34
    $region39: #{forward.5} parent=1 // pred_check_branch
      %37 = sbr.rel (%p35) target = $region41
    $region40: #{forward.5} parent=1 // pred_region
      %s38 = scalar_lea.smem [#allocation2], 0
      %39 = sst [smem:[%s38]] 0.0
    $region41: #{forward.5} parent=1 // pred_fallthru
      _
    %v40 = vld [vmem:[%s0] sm:$0xff]
    %v41 = vld [vmem:[%s0 + $0x8] sm:$0xff]
    %v42 = vld [vmem:[%s0 + $0x10] sm:$0xff]
    %v43 = vld [vmem:[%s0 + $0x18] sm:$0xff]
    %v44 = vpack.c.bf16 %v42, %v40
    %v45 = vpack.c.bf16 %v43, %v41
    %v46 = vld [vmem:[%s2] sm:$0xff]
    %v47 = vld [vmem:[%s2 + $0x8] sm:$0xff]
    %v48 = vld [vmem:[%s2 + $0x10] sm:$0xff]
    %v49 = vld [vmem:[%s2 + $0x18] sm:$0xff]
    %v50 = vld [vmem:[%s2 + $0x20] sm:$0xff]
    %v51 = vld [vmem:[%s2 + $0x28] sm:$0xff]
    %v52 = vld [vmem:[%s2 + $0x30] sm:$0xff]
    %v53 = vld [vmem:[%s2 + $0x38] sm:$0xff]
    %v54 = vld [vmem:[%s2 + $0x40] sm:$0xff]
    %v55 = vld [vmem:[%s2 + $0x48] sm:$0xff]
    %v56 = vld [vmem:[%s2 + $0x50] sm:$0xff]
    %v57 = vld [vmem:[%s2 + $0x58] sm:$0xff]
    %v58 = vld [vmem:[%s2 + $0x60] sm:$0xff]
    %v59 = vld [vmem:[%s2 + $0x68] sm:$0xff]
    %v60 = vld [vmem:[%s2 + $0x70] sm:$0xff]
    %v61 = vld [vmem:[%s2 + $0x78] sm:$0xff]
    %v62 = vld [vmem:[%s2 + $0x80] sm:$0xff]
    %v63 = vld [vmem:[%s2 + $0x88] sm:$0xff]
    %v64 = vld [vmem:[%s2 + $0x90] sm:$0xff]
    %v65 = vld [vmem:[%s2 + $0x98] sm:$0xff]
    %v66 = vld [vmem:[%s2 + $0xa0] sm:$0xff]
    %v67 = vld [vmem:[%s2 + $0xa8] sm:$0xff]
    %v68 = vld [vmem:[%s2 + $0xb0] sm:$0xff]
    %v69 = vld [vmem:[%s2 + $0xb8] sm:$0xff]
    %v70 = vld [vmem:[%s2 + $0xc0] sm:$0xff]
    %v71 = vld [vmem:[%s2 + $0xc8] sm:$0xff]
    %v72 = vld [vmem:[%s2 + $0xd0] sm:$0xff]
    %v73 = vld [vmem:[%s2 + $0xd8] sm:$0xff]
    %v74 = vld [vmem:[%s2 + $0xe0] sm:$0xff]
    %v75 = vld [vmem:[%s2 + $0xe8] sm:$0xff]
    %v76 = vld [vmem:[%s2 + $0xf0] sm:$0xff]
    %v77 = vld [vmem:[%s2 + $0xf8] sm:$0xff]
    %v78 = vld [vmem:[%s3] sm:$0x3]
    %v80 = vlaneseq
    %v81 = vshrl.u32 %v80, 7
    %v82 = vsub.s32 0, %v81
    %v83 = vrot.slane %v78, %v82
    %v84 = vlaneseq
    %v85 = vshrl.u32 %v84, 7
    %v86 = vsub.s32 1, %v85
    %v87 = vrot.slane %v78, %v86
    %v122 = vunpack.c.l.b16 %v46
    %v123 = vunpack.c.h.b16 %v46
    %v124 = vunpack.c.l.b16 %v47
    %v125 = vunpack.c.h.b16 %v47
    %v126 = vunpack.c.l.b16 %v48
    %v127 = vunpack.c.h.b16 %v48
    %v128 = vunpack.c.l.b16 %v49
    %v129 = vunpack.c.h.b16 %v49
    %v130 = vunpack.c.l.b16 %v50
    %v131 = vunpack.c.h.b16 %v50
    %v132 = vunpack.c.l.b16 %v51
    %v133 = vunpack.c.h.b16 %v51
    %v134 = vunpack.c.l.b16 %v52
    %v135 = vunpack.c.h.b16 %v52
    %v136 = vunpack.c.l.b16 %v53
    %v137 = vunpack.c.h.b16 %v53
    %v138 = vunpack.c.l.b16 %v54
    %v139 = vunpack.c.h.b16 %v54
    %v140 = vunpack.c.l.b16 %v55
    %v141 = vunpack.c.h.b16 %v55
    %v142 = vunpack.c.l.b16 %v56
    %v143 = vunpack.c.h.b16 %v56
    %v144 = vunpack.c.l.b16 %v57
    %v145 = vunpack.c.h.b16 %v57
    %v146 = vunpack.c.l.b16 %v58
    %v147 = vunpack.c.h.b16 %v58
    %v148 = vunpack.c.l.b16 %v59
    %v149 = vunpack.c.h.b16 %v59
    %v150 = vunpack.c.l.b16 %v60
    %v151 = vunpack.c.h.b16 %v60
    %v152 = vunpack.c.l.b16 %v61
    %v153 = vunpack.c.h.b16 %v61
    %v154 = vunpack.c.l.b16 %v62
    %v155 = vunpack.c.h.b16 %v62
    %v156 = vunpack.c.l.b16 %v63
    %v157 = vunpack.c.h.b16 %v63
    %v158 = vunpack.c.l.b16 %v64
    %v159 = vunpack.c.h.b16 %v64
    %v160 = vunpack.c.l.b16 %v65
    %v161 = vunpack.c.h.b16 %v65
    %v162 = vunpack.c.l.b16 %v66
    %v163 = vunpack.c.h.b16 %v66
    %v164 = vunpack.c.l.b16 %v67
    %v165 = vunpack.c.h.b16 %v67
    %v166 = vunpack.c.l.b16 %v68
    %v167 = vunpack.c.h.b16 %v68
    %v168 = vunpack.c.l.b16 %v69
    %v169 = vunpack.c.h.b16 %v69
    %v170 = vunpack.c.l.b16 %v70
    %v171 = vunpack.c.h.b16 %v70
    %v172 = vunpack.c.l.b16 %v71
    %v173 = vunpack.c.h.b16 %v71
    %v174 = vunpack.c.l.b16 %v72
    %v175 = vunpack.c.h.b16 %v72
    %v176 = vunpack.c.l.b16 %v73
    %v177 = vunpack.c.h.b16 %v73
    %v178 = vunpack.c.l.b16 %v74
    %v179 = vunpack.c.h.b16 %v74
    %v180 = vunpack.c.l.b16 %v75
    %v181 = vunpack.c.h.b16 %v75
    %v182 = vunpack.c.l.b16 %v76
    %v183 = vunpack.c.h.b16 %v76
    %v184 = vunpack.c.l.b16 %v77
    %v185 = vunpack.c.h.b16 %v77
    %v186 = vpack.c.b16 %v124, %v122
    %v187 = vpack.c.b16 %v125, %v123
    %v188 = vpack.c.b16 %v128, %v126
    %v189 = vpack.c.b16 %v129, %v127
    %v190 = vpack.c.b16 %v132, %v130
    %v191 = vpack.c.b16 %v133, %v131
    %v192 = vpack.c.b16 %v136, %v134
    %v193 = vpack.c.b16 %v137, %v135
    %v194 = vpack.c.b16 %v140, %v138
    %v195 = vpack.c.b16 %v141, %v139
    %v196 = vpack.c.b16 %v144, %v142
    %v197 = vpack.c.b16 %v145, %v143
    %v198 = vpack.c.b16 %v148, %v146
    %v199 = vpack.c.b16 %v149, %v147
    %v200 = vpack.c.b16 %v152, %v150
    %v201 = vpack.c.b16 %v153, %v151
    %v202 = vpack.c.b16 %v156, %v154
    %v203 = vpack.c.b16 %v157, %v155
    %v204 = vpack.c.b16 %v160, %v158
    %v205 = vpack.c.b16 %v161, %v159
    %v206 = vpack.c.b16 %v164, %v162
    %v207 = vpack.c.b16 %v165, %v163
    %v208 = vpack.c.b16 %v168, %v166
    %v209 = vpack.c.b16 %v169, %v167
    %v210 = vpack.c.b16 %v172, %v170
    %v211 = vpack.c.b16 %v173, %v171
    %v212 = vpack.c.b16 %v176, %v174
    %v213 = vpack.c.b16 %v177, %v175
    %v214 = vpack.c.b16 %v180, %v178
    %v215 = vpack.c.b16 %v181, %v179
    %v216 = vpack.c.b16 %v184, %v182
    %v217 = vpack.c.b16 %v185, %v183
    %250 = vmatprep.subr.bf16.mxu0 %v187
    %251 = vmatpush1.bf16.msra.mxu0 %v186
    %252 = vmatprep.subr.bf16.mxu0 %v189
    %253 = vmatpush1.bf16.msra.mxu0 %v188
    %254 = vmatprep.subr.bf16.mxu0 %v191
    %255 = vmatpush1.bf16.msra.mxu0 %v190
    %256 = vmatprep.subr.bf16.mxu0 %v193
    %257 = vmatpush1.bf16.msra.mxu0 %v192
    %258 = vmatprep.subr.bf16.mxu0 %v195
    %259 = vmatpush1.bf16.msra.mxu0 %v194
    %260 = vmatprep.subr.bf16.mxu0 %v197
    %261 = vmatpush1.bf16.msra.mxu0 %v196
    %262 = vmatprep.subr.bf16.mxu0 %v199
    %263 = vmatpush1.bf16.msra.mxu0 %v198
    %264 = vmatprep.subr.bf16.mxu0 %v201
    %265 = vmatpush1.bf16.msra.mxu0 %v200
    %266 = vmatprep.subr.bf16.mxu0 %v203
    %267 = vmatpush1.bf16.msra.mxu0 %v202
    %268 = vmatprep.subr.bf16.mxu0 %v205
    %269 = vmatpush1.bf16.msra.mxu0 %v204
    %270 = vmatprep.subr.bf16.mxu0 %v207
    %271 = vmatpush1.bf16.msra.mxu0 %v206
    %272 = vmatprep.subr.bf16.mxu0 %v209
    %273 = vmatpush1.bf16.msra.mxu0 %v208
    %274 = vmatprep.subr.bf16.mxu0 %v211
    %275 = vmatpush1.bf16.msra.mxu0 %v210
    %276 = vmatprep.subr.bf16.mxu0 %v213
    %277 = vmatpush1.bf16.msra.mxu0 %v212
    %278 = vmatprep.subr.bf16.mxu0 %v215
    %279 = vmatpush1.bf16.msra.mxu0 %v214
    %280 = vmatprep.subr.bf16.mxu0 %v217
    %281 = vmatpush1.bf16.msra.mxu0 %v216
    %282 = vmatprep.mubr.bf16.mxu0 %v45
    %283 = vmatmul.mubr.bf16.gmra.mrb[0].mxu0 %v44
    %v284 = vpop.f32.mrb[0].mxu0
    %v285 = vadd.f32 %v83, %v284
    %v286 = vpop.f32.mrb[0].mxu0
    %v287 = vadd.f32 %v87, %v286
    %v288 = vpop.f32.mrb[0].mxu0
    %v289 = vadd.f32 %v83, %v288
    %v290 = vpop.f32.mrb[0].mxu0
    %v291 = vadd.f32 %v87, %v290
    %292 = vdwg.mxu0
    %v293 = vmax.f32 %v285, 0.0
    %v294 = vmax.f32 %v289, 0.0
    %v295 = vpack.c.bf16 %v294, %v293
    %v296 = vld [vmem:[%s4] sm:$0xf]
    %v297 = vld [vmem:[%s4 + $0x4] sm:$0xf]
    %v298 = vld [vmem:[%s4 + $0x8] sm:$0xf]
    %v299 = vld [vmem:[%s4 + $0xc] sm:$0xf]
    %v300 = vld [vmem:[%s4 + $0x10] sm:$0xf]
    %v301 = vld [vmem:[%s4 + $0x14] sm:$0xf]
    %v302 = vld [vmem:[%s4 + $0x18] sm:$0xf]
    %v303 = vld [vmem:[%s4 + $0x1c] sm:$0xf]
    %v304 = vld [vmem:[%s4 + $0x20] sm:$0xf]
    %v305 = vld [vmem:[%s4 + $0x24] sm:$0xf]
    %v306 = vld [vmem:[%s4 + $0x28] sm:$0xf]
    %v307 = vld [vmem:[%s4 + $0x2c] sm:$0xf]
    %v308 = vld [vmem:[%s4 + $0x30] sm:$0xf]
    %v309 = vld [vmem:[%s4 + $0x34] sm:$0xf]
    %v310 = vld [vmem:[%s4 + $0x38] sm:$0xf]
    %v311 = vld [vmem:[%s4 + $0x3c] sm:$0xf]
    %v312 = vld [vmem:[%s5] sm:$0x1]
    %v314 = vlaneseq
    %v315 = vshrl.u32 %v314, 7
    %v316 = vsub.s32 0, %v315
    %v317 = vrot.slane %v312, %v316
    %v335 = vunpack.c.l.b16 %v296
    %v336 = vunpack.c.l.b16 %v297
    %v337 = vunpack.c.l.b16 %v298
    %v338 = vunpack.c.l.b16 %v299
    %v339 = vunpack.c.l.b16 %v300
    %v340 = vunpack.c.l.b16 %v301
    %v341 = vunpack.c.l.b16 %v302
    %v342 = vunpack.c.l.b16 %v303
    %v343 = vunpack.c.l.b16 %v304
    %v344 = vunpack.c.l.b16 %v305
    %v345 = vunpack.c.l.b16 %v306
    %v346 = vunpack.c.l.b16 %v307
    %v347 = vunpack.c.l.b16 %v308
    %v348 = vunpack.c.l.b16 %v309
    %v349 = vunpack.c.l.b16 %v310
    %v350 = vunpack.c.l.b16 %v311
    %v351 = vpack.c.b16 %v336, %v335
    %v352 = vpack.c.b16 %v338, %v337
    %v353 = vpack.c.b16 %v340, %v339
    %v354 = vpack.c.b16 %v342, %v341
    %v355 = vpack.c.b16 %v344, %v343
    %v356 = vpack.c.b16 %v346, %v345
    %v357 = vpack.c.b16 %v348, %v347
    %v358 = vpack.c.b16 %v350, %v349
    %367 = vmatprep.subr.bf16.mxu0 0
    %368 = vmatpush1.bf16.msra.mxu0 %v351
    %369 = vmatprep.subr.bf16.mxu0 0
    %370 = vmatpush1.bf16.msra.mxu0 %v352
    %371 = vmatprep.subr.bf16.mxu0 0
    %372 = vmatpush1.bf16.msra.mxu0 %v353
    %373 = vmatprep.subr.bf16.mxu0 0
    %374 = vmatpush1.bf16.msra.mxu0 %v354
    %375 = vmatprep.subr.bf16.mxu0 0
    %376 = vmatpush1.bf16.msra.mxu0 %v355
    %377 = vmatprep.subr.bf16.mxu0 0
    %378 = vmatpush1.bf16.msra.mxu0 %v356
    %379 = vmatprep.subr.bf16.mxu0 0
    %380 = vmatpush1.bf16.msra.mxu0 %v357
    %381 = vmatprep.subr.bf16.mxu0 0
    %382 = vmatpush1.bf16.msra.mxu0 %v358
    %383 = vmatprep.subr.bf16.mxu0 0
    %384 = vmatpush1.bf16.msra.mxu0 0
    %385 = vmatprep.subr.bf16.mxu0 0
    %386 = vmatpush1.bf16.msra.mxu0 0
    %387 = vmatprep.subr.bf16.mxu0 0
    %388 = vmatpush1.bf16.msra.mxu0 0
    %389 = vmatprep.subr.bf16.mxu0 0
    %390 = vmatpush1.bf16.msra.mxu0 0
    %391 = vmatprep.subr.bf16.mxu0 0
    %392 = vmatpush1.bf16.msra.mxu0 0
    %393 = vmatprep.subr.bf16.mxu0 0
    %394 = vmatpush1.bf16.msra.mxu0 0
    %395 = vmatprep.subr.bf16.mxu0 0
    %396 = vmatpush1.bf16.msra.mxu0 0
    %397 = vmatprep.subr.bf16.mxu0 0
    %398 = vmatpush1.bf16.msra.mxu0 0
    %399 = vmatprep.mubr.bf16.mxu0 0
    %400 = vmatmul.mubr.bf16.gmra.mrb[0].mxu0 %v295
    %v401 = vpop.f32.mrb[0].mxu0
    %v402 = vadd.f32 %v317, %v401
    %v403 = vpop.f32.mrb[0].mxu0
    %v404 = vpop.f32.mrb[0].mxu0
    %v405 = vadd.f32 %v317, %v404
    %v406 = vpop.f32.mrb[0].mxu0
    %407 = vdwg.mxu0
    %v408 = vmax.f32 %v402, 0.0
    %v409 = vmax.f32 %v405, 0.0
    %v410 = vpack.c.bf16 %v409, %v408
    %v411 = vld [vmem:[%s6] sm:$0xf]
    %v412 = vld [vmem:[%s6 + $0x4] sm:$0xf]
    %v413 = vld [vmem:[%s6 + $0x8] sm:$0xf]
    %v414 = vld [vmem:[%s6 + $0xc] sm:$0xf]
    %v415 = vld [vmem:[%s6 + $0x10] sm:$0xf]
    %v416 = vld [vmem:[%s6 + $0x14] sm:$0xf]
    %v417 = vld [vmem:[%s6 + $0x18] sm:$0xf]
    %v418 = vld [vmem:[%s6 + $0x1c] sm:$0xf]
    %v419 = vld [vmem:[%s6 + $0x20] sm:$0xf]
    %v420 = vld [vmem:[%s6 + $0x24] sm:$0xf]
    %v421 = vld [vmem:[%s6 + $0x28] sm:$0xf]
    %v422 = vld [vmem:[%s6 + $0x2c] sm:$0xf]
    %v423 = vld [vmem:[%s6 + $0x30] sm:$0xf]
    %v424 = vld [vmem:[%s6 + $0x34] sm:$0xf]
    %v425 = vld [vmem:[%s6 + $0x38] sm:$0xf]
    %v426 = vld [vmem:[%s6 + $0x3c] sm:$0xf]
    %v427 = vld [vmem:[%s7] sm:$0x1]
    %v429 = vlaneseq
    %v430 = vshrl.u32 %v429, 7
    %v431 = vsub.s32 0, %v430
    %v432 = vrot.slane %v427, %v431
    %v450 = vunpack.c.l.b16 %v411
    %v451 = vunpack.c.l.b16 %v412
    %v452 = vunpack.c.l.b16 %v413
    %v453 = vunpack.c.l.b16 %v414
    %v454 = vunpack.c.l.b16 %v415
    %v455 = vunpack.c.l.b16 %v416
    %v456 = vunpack.c.l.b16 %v417
    %v457 = vunpack.c.l.b16 %v418
    %v458 = vunpack.c.l.b16 %v419
    %v459 = vunpack.c.l.b16 %v420
    %v460 = vunpack.c.l.b16 %v421
    %v461 = vunpack.c.l.b16 %v422
    %v462 = vunpack.c.l.b16 %v423
    %v463 = vunpack.c.l.b16 %v424
    %v464 = vunpack.c.l.b16 %v425
    %v465 = vunpack.c.l.b16 %v426
    %v466 = vpack.c.b16 %v451, %v450
    %v467 = vpack.c.b16 %v453, %v452
    %v468 = vpack.c.b16 %v455, %v454
    %v469 = vpack.c.b16 %v457, %v456
    %v470 = vpack.c.b16 %v459, %v458
    %v471 = vpack.c.b16 %v461, %v460
    %v472 = vpack.c.b16 %v463, %v462
    %v473 = vpack.c.b16 %v465, %v464
    %482 = vmatprep.subr.bf16.mxu0 0
    %483 = vmatpush1.bf16.msra.mxu0 %v466
    %484 = vmatprep.subr.bf16.mxu0 0
    %485 = vmatpush1.bf16.msra.mxu0 %v467
    %486 = vmatprep.subr.bf16.mxu0 0
    %487 = vmatpush1.bf16.msra.mxu0 %v468
    %488 = vmatprep.subr.bf16.mxu0 0
    %489 = vmatpush1.bf16.msra.mxu0 %v469
    %490 = vmatprep.subr.bf16.mxu0 0
    %491 = vmatpush1.bf16.msra.mxu0 %v470
    %492 = vmatprep.subr.bf16.mxu0 0
    %493 = vmatpush1.bf16.msra.mxu0 %v471
    %494 = vmatprep.subr.bf16.mxu0 0
    %495 = vmatpush1.bf16.msra.mxu0 %v472
    %496 = vmatprep.subr.bf16.mxu0 0
    %497 = vmatpush1.bf16.msra.mxu0 %v473
    %498 = vmatprep.subr.bf16.mxu0 0
    %499 = vmatpush1.bf16.msra.mxu0 0
    %500 = vmatprep.subr.bf16.mxu0 0
    %501 = vmatpush1.bf16.msra.mxu0 0
    %502 = vmatprep.subr.bf16.mxu0 0
    %503 = vmatpush1.bf16.msra.mxu0 0
    %504 = vmatprep.subr.bf16.mxu0 0
    %505 = vmatpush1.bf16.msra.mxu0 0
    %506 = vmatprep.subr.bf16.mxu0 0
    %507 = vmatpush1.bf16.msra.mxu0 0
    %508 = vmatprep.subr.bf16.mxu0 0
    %509 = vmatpush1.bf16.msra.mxu0 0
    %510 = vmatprep.subr.bf16.mxu0 0
    %511 = vmatpush1.bf16.msra.mxu0 0
    %512 = vmatprep.subr.bf16.mxu0 0
    %513 = vmatpush1.bf16.msra.mxu0 0
    %514 = vmatprep.mubr.bf16.mxu0 0
    %515 = vmatmul.mubr.bf16.gmra.mrb[0].mxu0 %v410
    %v516 = vpop.f32.mrb[0].mxu0
    %v517 = vadd.f32 %v432, %v516
    %v518 = vpop.f32.mrb[0].mxu0
    %v519 = vpop.f32.mrb[0].mxu0
    %v520 = vadd.f32 %v432, %v519
    %v521 = vpop.f32.mrb[0].mxu0
    %522 = vdwg.mxu0
    %v523 = vmax.f32 %v517, 0.0
    %v524 = vmax.f32 %v520, 0.0
    %v525 = vadd.f32 %v523, %v287
    %v526 = vadd.f32 %v524, %v291
    %v527 = vpack.c.bf16 %v526, %v525
    %v528 = vld [vmem:[%s8] sm:$0xf]
    %v529 = vld [vmem:[%s8 + $0x4] sm:$0xf]
    %v530 = vld [vmem:[%s8 + $0x8] sm:$0xf]
    %v531 = vld [vmem:[%s8 + $0xc] sm:$0xf]
    %v532 = vld [vmem:[%s8 + $0x10] sm:$0xf]
    %v533 = vld [vmem:[%s8 + $0x14] sm:$0xf]
    %v534 = vld [vmem:[%s8 + $0x18] sm:$0xf]
    %v535 = vld [vmem:[%s8 + $0x1c] sm:$0xf]
    %v536 = vld [vmem:[%s8 + $0x20] sm:$0xf]
    %v537 = vld [vmem:[%s8 + $0x24] sm:$0xf]
    %v538 = vld [vmem:[%s8 + $0x28] sm:$0xf]
    %v539 = vld [vmem:[%s8 + $0x2c] sm:$0xf]
    %v540 = vld [vmem:[%s8 + $0x30] sm:$0xf]
    %v541 = vld [vmem:[%s8 + $0x34] sm:$0xf]
    %v542 = vld [vmem:[%s8 + $0x38] sm:$0xf]
    %v543 = vld [vmem:[%s8 + $0x3c] sm:$0xf]
    %v560 = vunpack.c.l.b16 %v528
    %v561 = vunpack.c.l.b16 %v529
    %v562 = vunpack.c.l.b16 %v530
    %v563 = vunpack.c.l.b16 %v531
    %v564 = vunpack.c.l.b16 %v532
    %v565 = vunpack.c.l.b16 %v533
    %v566 = vunpack.c.l.b16 %v534
    %v567 = vunpack.c.l.b16 %v535
    %v568 = vunpack.c.l.b16 %v536
    %v569 = vunpack.c.l.b16 %v537
    %v570 = vunpack.c.l.b16 %v538
    %v571 = vunpack.c.l.b16 %v539
    %v572 = vunpack.c.l.b16 %v540
    %v573 = vunpack.c.l.b16 %v541
    %v574 = vunpack.c.l.b16 %v542
    %v575 = vunpack.c.l.b16 %v543
    %v576 = vpack.c.b16 %v561, %v560
    %v577 = vpack.c.b16 %v563, %v562
    %v578 = vpack.c.b16 %v565, %v564
    %v579 = vpack.c.b16 %v567, %v566
    %v580 = vpack.c.b16 %v569, %v568
    %v581 = vpack.c.b16 %v571, %v570
    %v582 = vpack.c.b16 %v573, %v572
    %v583 = vpack.c.b16 %v575, %v574
    %592 = vmatprep.subr.bf16.mxu0 0
    %593 = vmatpush1.bf16.msra.mxu0 %v576
    %594 = vmatprep.subr.bf16.mxu0 0
    %595 = vmatpush1.bf16.msra.mxu0 %v577
    %596 = vmatprep.subr.bf16.mxu0 0
    %597 = vmatpush1.bf16.msra.mxu0 %v578
    %598 = vmatprep.subr.bf16.mxu0 0
    %599 = vmatpush1.bf16.msra.mxu0 %v579
    %600 = vmatprep.subr.bf16.mxu0 0
    %601 = vmatpush1.bf16.msra.mxu0 %v580
    %602 = vmatprep.subr.bf16.mxu0 0
    %603 = vmatpush1.bf16.msra.mxu0 %v581
    %604 = vmatprep.subr.bf16.mxu0 0
    %605 = vmatpush1.bf16.msra.mxu0 %v582
    %606 = vmatprep.subr.bf16.mxu0 0
    %607 = vmatpush1.bf16.msra.mxu0 %v583
    %608 = vmatprep.subr.bf16.mxu0 0
    %609 = vmatpush1.bf16.msra.mxu0 0
    %610 = vmatprep.subr.bf16.mxu0 0
    %611 = vmatpush1.bf16.msra.mxu0 0
    %612 = vmatprep.subr.bf16.mxu0 0
    %613 = vmatpush1.bf16.msra.mxu0 0
    %614 = vmatprep.subr.bf16.mxu0 0
    %615 = vmatpush1.bf16.msra.mxu0 0
    %616 = vmatprep.subr.bf16.mxu0 0
    %617 = vmatpush1.bf16.msra.mxu0 0
    %618 = vmatprep.subr.bf16.mxu0 0
    %619 = vmatpush1.bf16.msra.mxu0 0
    %620 = vmatprep.subr.bf16.mxu0 0
    %621 = vmatpush1.bf16.msra.mxu0 0
    %622 = vmatprep.subr.bf16.mxu0 0
    %623 = vmatpush1.bf16.msra.mxu0 0
    %624 = vmatprep.mubr.bf16.mxu0 0
    %625 = vmatmul.mubr.bf16.gmra.mrb[0].mxu0 %v527
    %v626 = vpop.f32.mrb[0].mxu0
    %v627 = vadd.f32 0.0, %v626
    %v628 = vpop.f32.mrb[0].mxu0
    %v629 = vpop.f32.mrb[0].mxu0
    %v630 = vadd.f32 0.0, %v629
    %v631 = vpop.f32.mrb[0].mxu0
    %632 = vdwg.mxu0
    %v633 = vld [vmem:[%s1] sm:$0xff]
    %v634 = vld [vmem:[%s1 + $0x8] sm:$0xff]
    %v635 = vlaneseq
    %v636 = vand.u32 %v635, 127
    %vm637 = vcmp.ge.s32.totalorder %v633, 0
    %vm638 = vcmp.ge.s32.totalorder %v634, 0
    %639 = vset.pattern.permute.xlu0 0
    %640 = vperm.xlu0 %639, %v633
    %v641 = vpop.permute.xlu0 %640
    %642 = vset.pattern.permute.xlu0 0
    %643 = vperm.xlu0 %642, %v634
    %v644 = vpop.permute.xlu0 %643
    %vm645 = vcmp.eq.s32.totalorder %v636, %v641
    %vm646 = vcmp.eq.s32.totalorder %v636, %v644
    %v647 = vsel %vm637, 1, 0
    %v648 = vsel %vm638, 1, 0
    %649 = vset.pattern.permute.xlu0 0
    %650 = vperm.xlu0 %649, %v647
    %v651 = vpop.permute.xlu0 %650
    %652 = vset.pattern.permute.xlu0 0
    %653 = vperm.xlu0 %652, %v648
    %v654 = vpop.permute.xlu0 %653
    %vm655 = vcmp.eq.s32.totalorder %v651, 1
    %vm656 = vcmp.eq.s32.totalorder %v654, 1
    %vm657 = vmand %vm645, %vm655
    %vm658 = vmand %vm646, %vm656
    %vm659 = vcmp.ne.s32.totalorder %v636, %v641
    %vm660 = vcmp.ne.s32.totalorder %v636, %v644
    %vm661 = vmand %vm659, %vm655
    %vm662 = vmand %vm660, %vm656
    %vm663 = vcmp.lt.s32.totalorder %v636, 2
    %vm664 = vmand %vm661, %vm663
    %vm665 = vmand %vm662, %vm663
    %v666 = vsub.f32 0.0, %v627
    %v667 = vsub.f32 0.0, %v630
    %v668 = vmax.f32 %v666, 0.0
    %v669 = vmax.f32 %v667, 0.0
    %v670 = vand.u32 2147483647, %v627
    %v671 = vand.u32 2147483647, %v630
    %v672 = vsub.f32 0.0, %v670
    %v673 = vsub.f32 0.0, %v671
    %v674 = vmul.f32 %v672, 1.442695
    %v675 = vpow.pop %v674
    %v676 = vmul.f32 %v673, 1.442695
    %v677 = vpow.pop %v676
    %v678 = vadd.f32 %v675, 1.0
    %v679 = vadd.f32 %v677, 1.0
    %v680 = vlog2.pop %v678
    %v681 = vmul.f32 %v680, 0.6931472
    %v682 = vlog2.pop %v679
    %v683 = vmul.f32 %v682, 0.6931472
    %v684 = vadd.f32 %v668, %v681
    %v685 = vadd.f32 %v669, %v683
    %v686 = vsub.f32 0.6931472, %v684
    %v687 = vsub.f32 0.6931472, %v685
    %v688 = vsel %vm657, %v686, 0.0
    %v689 = vsel %vm658, %v687, 0.0
    %v690 = vadd.f32 %v688, %v689
    %691 = vadd.xlane.f32.xlu0 %v690
    %v692 = vpop.xlane.xlu0 %691
    %v693 = vrot.slane %v692, 4
    %v694 = vadd.f32 %v692, %v693
    %v695 = vrot.slane %v694, 2
    %v696 = vadd.f32 %v694, %v695
    %v697 = vrot.slane %v696, 1
    %v698 = vadd.f32 %v696, %v697
    %s699 = vtos %v698
    %s700 = smul.f32 %s699, 0.0625
    %v701 = vadd.f32 %v684, %v627
    %v702 = vadd.f32 %v685, %v630
    %v703 = vsub.f32 %v701, 0.6931472
    %v704 = vsub.f32 %v702, 0.6931472
    %v705 = vsel %vm664, %v703, 0.0
    %v706 = vsel %vm665, %v704, 0.0
    %v707 = vadd.f32 %v705, %v706
    %708 = vadd.xlane.f32.xlu0 %v707
    %v709 = vpop.xlane.xlu0 %708
    %v710 = vrot.slane %v709, 4
    %v711 = vadd.f32 %v709, %v710
    %v712 = vrot.slane %v711, 2
    %v713 = vadd.f32 %v711, %v712
    %v714 = vrot.slane %v713, 1
    %v715 = vadd.f32 %v713, %v714
    %s716 = vtos %v715
    %s717 = smul.f32 %s716, 0.0625
    %s718 = sld [smem:[#allocation2]]
    %s719 = ssub.f32 %s717, %s700
    %s720 = sadd.f32 %s718, %s719
    %s721 = scalar_lea.smem [#allocation2], 0
    %722 = sst [smem:[%s721]] %s720
    // Predicated region
    $region42: #{forward.5} parent=1 // pred_check
      %p723 = pneg %p34
    $region43: #{forward.5} parent=1 // pred_check_branch
      %725 = sbr.rel (%p723) target = $region45
    $region44: #{forward.5} parent=1 // pred_region
      %s726 = sld [smem:[#allocation2]]
      %s727 = scalar_lea.smem [#allocation3], 0
      %728 = sst [smem:[%s727]] %s726
    $region45: #{forward.5} parent=1 // pred_fallthru
      _
    // Predicated region
    $region46: #{forward.5} parent=1 // pred_check
      _
    $region47: #{forward.5} parent=1 // pred_check_branch
      %730 = sbr.rel (0) target = $region49
    $region48: #{forward.5} parent=1 // pred_region
      %s732 = ssub.s32 16, 16
      %733 = vsyncadd [#allocation4], %s732
      %736 = dma.smem_to_hbm [#allocation3], 16, %s9, [#allocation4]
    $region49: #{forward.5} parent=1 // pred_fallthru
      _
    // Predicated region
    $region50: #{forward.5} parent=1 // pred_check
      _
    $region51: #{forward.5} parent=1 // pred_check_branch
      %738 = sbr.rel (0) target = $region53
    $region52: #{forward.5} parent=1 // pred_region
      %739 = dma.done [#allocation4], 16
    $region53: #{forward.5} parent=1 // pred_fallthru
      _
    %740 = sfence
    %741 = vsyncpa [#allocation4], 1

</llo_original>
